<compile_context>
chip_gen: v7x
topology: tpu7x:2x2x1
jax: 0.10.0
libtpu: 0.0.40
codegen_flags: <defaults>
</compile_context>

<pallas_src>
import functools

import jax
import jax.numpy as jnp
from jax import lax
from jax.experimental import pallas as pl
from jax.experimental.pallas import tpu as pltpu

# ----------------------------------------------------------------------------
# Config
# ----------------------------------------------------------------------------
N_HEAD = 2
D_MODEL = 32
D_HEAD = 8
LN_EPS = 1e-5
SCALE = 1.0 / (D_HEAD ** 0.5)


# ----------------------------------------------------------------------------
# Fused kernel: per-batch attention + output proj + residual + LayerNorm
# ----------------------------------------------------------------------------
def _fused_kernel(h_ref, enc_ref, rkz_ref, wq_ref, wkv_ref, wo_ref,
                  rwb_ref, rrb_ref, g_ref, b_ref, out_ref,
                  *, n_head, d_head, scale, eps):
    h = h_ref[0]            # (q, d_model)
    enc = enc_ref[0]        # (k, d_model)
    rkz = rkz_ref[...]      # (r+1, H*D); row 0 is the rel_shift zero pad
    hd = n_head * d_head
    qlen = h.shape[0]
    rlen = rkz.shape[0] - 1

    # Wide projections: one MXU matmul per input tensor (not per head).
    qh = jnp.dot(h, wq_ref[...], preferred_element_type=jnp.float32)      # (q, H*D)
    kv = jnp.dot(enc, wkv_ref[...], preferred_element_type=jnp.float32)   # (k, 2*H*D)

    # Fold the softmax scale into the query-side bias adds (shift is linear
    # and the pad is zero, so scaling before the shift is equivalent).
    rw_q = (qh + rwb_ref[...]) * scale                                    # (q, H*D)
    rr_q = (qh + rrb_ref[...]) * scale                                    # (q, H*D)

    av_parts = []
    for n in range(n_head):
        lo, hi = n * d_head, (n + 1) * d_head
        kh = kv[:, lo:hi]                                                 # (k, D)
        vh = kv[:, hd + lo:hd + hi]                                       # (k, D)

        # AC_n = (q + r_w_bias) @ k^T   (scale already folded in)
        ac = lax.dot_general(rw_q[:, lo:hi], kh, (((1,), (1,)), ((), ())),
                             preferred_element_type=jnp.float32)          # (q, k)
        # P_n = (q + r_r_bias) @ [0; r]^T  -> column 0 is the zero pad
        p_pad = lax.dot_general(rr_q[:, lo:hi], rkz[:, lo:hi],
                                (((1,), (1,)), ((), ())),
                                preferred_element_type=jnp.float32)       # (q, r+1)

        # _rel_shift on the VMEM-resident tile: result[a, b] =
        #   P[a,   r - a + b]     for b <= a
        #   P[a+1, b - a - 1]     for b >  a    (b == a+1 hits the zero column)
        # Built with static row slices + concatenation (no reshapes).
        rows = []
        for a in range(qlen):
            left = p_pad[a:a + 1, rlen - a:rlen + 1]                      # (1, a+1)
            if a + 1 < qlen:
                right = p_pad[a + 1:a + 2, 0:rlen - a - 1]                # (1, r-a-1)
                rows.append(jnp.concatenate([left, right], axis=1))
            else:
                rows.append(left)                                         # last row: full
        bd = jnp.concatenate(rows, axis=0)                                # (q, r)

        s = ac + bd                                                       # (q, k)
        s = s - jnp.max(s, axis=-1, keepdims=True)
        e = jnp.exp(s)
        p = e * pl.reciprocal(jnp.sum(e, axis=-1, keepdims=True), approx=True)
        av_parts.append(jnp.dot(p, vh, preferred_element_type=jnp.float32))  # (q, D)

    av = jnp.concatenate(av_parts, axis=1)                                # (q, H*D)
    attn_out = jnp.dot(av, wo_ref[...], preferred_element_type=jnp.float32)  # (q, d_model)

    # Residual + LayerNorm (post-lnorm path).
    x = h + attn_out
    mu = jnp.mean(x, axis=-1, keepdims=True)
    var = jnp.mean((x - mu) ** 2, axis=-1, keepdims=True)
    y = (x - mu) * lax.rsqrt(var + eps)
    out_ref[0] = y * g_ref[...] + b_ref[...]


# ----------------------------------------------------------------------------
# Wrapper
# ----------------------------------------------------------------------------
def rel_partial_mha_forward(hidden_states, encoder_hidden_states, rel_pos_emb,
                            params):
    qlen, bsz, d_model = hidden_states.shape
    klen = encoder_hidden_states.shape[0]
    rlen = rel_pos_emb.shape[0]
    n_head, d_head = N_HEAD, D_HEAD
    hd = n_head * d_head
    # In-kernel rel_shift uses the square-case index math (as does AC + BD).
    assert qlen == klen == rlen, "fused kernel assumes qlen == klen == rlen"

    # Batch-major views (one XLA transpose each).  A squeezed-batch BlockSpec
    # over the seq-major layout would put a size-1 block on a size-2 sublane
    # dim, which the TPU tiling rules do not guarantee; the transpose is tiny
    # at these shapes.
    h_b = jnp.transpose(hidden_states, (1, 0, 2))                # (b, q, m)
    enc_b = jnp.transpose(encoder_hidden_states, (1, 0, 2))      # (b, k, m)

    # Hoist the batch-independent rel projection out of the kernel and prepend
    # the rel_shift zero pad as an extra zero row of the projected table.
    r_head_k = rel_pos_emb @ params["w_r"]                       # (r, H*D)
    rkz = jnp.concatenate(
        [jnp.zeros((1, hd), r_head_k.dtype), r_head_k], axis=0)  # (r+1, H*D)

    rwb = params["r_w_bias"].reshape(1, hd)
    rrb = params["r_r_bias"].reshape(1, hd)
    gamma = params["ln_gamma"].reshape(1, d_model)
    beta = params["ln_beta"].reshape(1, d_model)

    def full2(shape):
        return pl.BlockSpec(shape, lambda b: (0, 0))

    out_b = pl.pallas_call(
        functools.partial(_fused_kernel, n_head=n_head, d_head=d_head,
                          scale=SCALE, eps=LN_EPS),
        grid=(bsz,),
        in_specs=[
            pl.BlockSpec((1, qlen, d_model), lambda b: (b, 0, 0)),   # hidden
            pl.BlockSpec((1, klen, d_model), lambda b: (b, 0, 0)),   # encoder
            full2((rlen + 1, hd)),                                   # rel proj (+0 row)
            full2((d_model, hd)),                                    # w_q
            full2((d_model, 2 * hd)),                                # w_kv
            full2((hd, d_model)),                                    # w_o
            full2((1, hd)),                                          # r_w_bias
            full2((1, hd)),                                          # r_r_bias
            full2((1, d_model)),                                     # ln gamma
            full2((1, d_model)),                                     # ln beta
        ],
        out_specs=pl.BlockSpec((1, qlen, d_model), lambda b: (b, 0, 0)),
        out_shape=jax.ShapeDtypeStruct((bsz, qlen, d_model), jnp.float32),
        compiler_params=pltpu.CompilerParams(dimension_semantics=("parallel",)),
    )(h_b, enc_b, rkz, params["w_q"], params["w_kv"], params["w_o"],
      rwb, rrb, gamma, beta)

    return jnp.transpose(out_b, (1, 0, 2))  # (qlen, bsz, d_model)


# ----------------------------------------------------------------------------
# Pure-JAX reference (mirrors the PyTorch forward exactly) for verification
# ----------------------------------------------------------------------------
def reference_forward(hidden_states, encoder_hidden_states, rel_pos_emb, params):
    qlen, bsz, d_model = hidden_states.shape
    klen = encoder_hidden_states.shape[0]
    rlen = rel_pos_emb.shape[0]
    H, D = N_HEAD, D_HEAD
    w_head_q = hidden_states @ params["w_q"]
    mem = encoder_hidden_states @ params["w_kv"]
    w_head_k, w_head_v = mem[..., :H * D], mem[..., H * D:]
    r_head_k = rel_pos_emb @ params["w_r"]
    w_head_q = w_head_q.reshape(qlen, bsz, H, D)
    w_head_k = w_head_k.reshape(klen, bsz, H, D)
    w_head_v = w_head_v.reshape(klen, bsz, H, D)
    r_head_k = r_head_k.reshape(rlen, H, D)
    AC = jnp.einsum('ibnd,jbnd->ijbn', w_head_q + params["r_w_bias"], w_head_k)
    BD = jnp.einsum('ibnd,jnd->ijbn', w_head_q + params["r_r_bias"], r_head_k)
    # _rel_shift
    zp = jnp.zeros((qlen, 1, bsz, H), BD.dtype)
    xpad = jnp.concatenate([zp, BD], axis=1).reshape(rlen + 1, qlen, bsz, H)
    BD = xpad[1:].reshape(qlen, rlen, bsz, H)
    score = (AC + BD) * SCALE
    prob = jax.nn.softmax(score, axis=1)
    vec = jnp.einsum('ijbn,jbnd->ibnd', prob, w_head_v).reshape(qlen, bsz, H * D)
    attn_out = vec @ params["w_o"]
    x = hidden_states + attn_out
    mu = x.mean(-1, keepdims=True)
    var = ((x - mu) ** 2).mean(-1, keepdims=True)
    y = (x - mu) / jnp.sqrt(var + LN_EPS)
    return y * params["ln_gamma"] + params["ln_beta"]


# ----------------------------------------------------------------------------
# Main
# ----------------------------------------------------------------------------
if __name__ == "__main__":
    qlen, klen, rlen, bsz = 8, 8, 8, 2

    key = jax.random.PRNGKey(0)
    keys = jax.random.split(key, 10)

    # Deterministic synthetic parameters (shapes from the module __init__).
    params = {
        # q_net: Linear(d_model, H*D, bias=False) -> stored transposed (in, out)
        "w_q": 0.05 * jax.random.normal(keys[0], (D_MODEL, N_HEAD * D_HEAD), jnp.float32),
        # kv_net: Linear(d_model, 2*H*D, bias=False)
        "w_kv": 0.05 * jax.random.normal(keys[1], (D_MODEL, 2 * N_HEAD * D_HEAD), jnp.float32),
        # r_net: Linear(d_model, H*D, bias=False)
        "w_r": 0.05 * jax.random.normal(keys[2], (D_MODEL, N_HEAD * D_HEAD), jnp.float32),
        # o_net: Linear(H*D, d_model, bias=False)
        "w_o": 0.05 * jax.random.normal(keys[3], (N_HEAD * D_HEAD, D_MODEL), jnp.float32),
        "r_w_bias": 0.05 * jax.random.normal(keys[4], (N_HEAD, D_HEAD), jnp.float32),
        "r_r_bias": 0.05 * jax.random.normal(keys[5], (N_HEAD, D_HEAD), jnp.float32),
        "ln_gamma": jnp.ones((D_MODEL,), jnp.float32),
        "ln_beta": jnp.zeros((D_MODEL,), jnp.float32),
    }

    hidden_states = jax.random.normal(keys[6], (qlen, bsz, D_MODEL), jnp.float32)
    encoder_hidden_states = jax.random.normal(keys[7], (klen, bsz, D_MODEL), jnp.float32)
    rel_pos_emb = jax.random.normal(keys[8], (rlen, D_MODEL), jnp.float32)

    out = rel_partial_mha_forward(hidden_states, encoder_hidden_states,
                                  rel_pos_emb, params)
    out = jax.block_until_ready(out)

    with jax.default_matmul_precision("highest"):
        ref = reference_forward(hidden_states, encoder_hidden_states,
                                rel_pos_emb, params)
    ref = jax.block_until_ready(ref)

    assert out.shape == (qlen, bsz, D_MODEL)
    assert jnp.allclose(out, ref, atol=5e-3, rtol=5e-3), (
        f"max abs err = {float(jnp.max(jnp.abs(out - ref)))}")

    print("KERNEL_OK")
</pallas_src>

<mosaic_0001>
module attributes {stable_mosaic.version = 11 : i64} {
  func.func @_fused_kernel(%arg0: i32, %arg1: memref<1x8x32xf32, #tpu.memory_space<vmem>>, %arg2: memref<1x8x32xf32, #tpu.memory_space<vmem>>, %arg3: memref<9x16xf32, #tpu.memory_space<vmem>>, %arg4: memref<32x16xf32, #tpu.memory_space<vmem>>, %arg5: memref<32x32xf32, #tpu.memory_space<vmem>>, %arg6: memref<16x32xf32, #tpu.memory_space<vmem>>, %arg7: memref<1x16xf32, #tpu.memory_space<vmem>>, %arg8: memref<1x16xf32, #tpu.memory_space<vmem>>, %arg9: memref<1x32xf32, #tpu.memory_space<vmem>>, %arg10: memref<1x32xf32, #tpu.memory_space<vmem>>, %arg11: memref<1x8x32xf32, #tpu.memory_space<vmem>>) attributes {dimension_semantics = [#tpu.dimension_semantics<parallel>], iteration_bounds = array<i64: 2>, scalar_prefetch = 0 : i64, scratch_operands = 0 : i64, tpu.core_type = #tpu.core_type<tc>, window_params = [{transform_indices = @transform_0, window_bounds = array<i64: 1, 8, 32>}, {transform_indices = @transform_1, window_bounds = array<i64: 1, 8, 32>}, {pipeline_mode = #tpu.pipeline_mode<synchronous>, transform_indices = @transform_2, window_bounds = array<i64: 9, 16>}, {pipeline_mode = #tpu.pipeline_mode<synchronous>, transform_indices = @transform_3, window_bounds = array<i64: 32, 16>}, {pipeline_mode = #tpu.pipeline_mode<synchronous>, transform_indices = @transform_4, window_bounds = array<i64: 32, 32>}, {pipeline_mode = #tpu.pipeline_mode<synchronous>, transform_indices = @transform_5, window_bounds = array<i64: 16, 32>}, {pipeline_mode = #tpu.pipeline_mode<synchronous>, transform_indices = @transform_6, window_bounds = array<i64: 1, 16>}, {pipeline_mode = #tpu.pipeline_mode<synchronous>, transform_indices = @transform_7, window_bounds = array<i64: 1, 16>}, {pipeline_mode = #tpu.pipeline_mode<synchronous>, transform_indices = @transform_8, window_bounds = array<i64: 1, 32>}, {pipeline_mode = #tpu.pipeline_mode<synchronous>, transform_indices = @transform_9, window_bounds = array<i64: 1, 32>}, {transform_indices = @transform_10, window_bounds = array<i64: 1, 8, 32>}]} {
    %c0 = arith.constant 0 : index
    %c0_0 = arith.constant 0 : index
    %c0_1 = arith.constant 0 : index
    %0 = vector.load %arg1[%c0, %c0_0, %c0_1] : memref<1x8x32xf32, #tpu.memory_space<vmem>>, vector<1x8x32xf32>
    %1 = vector.shape_cast %0 : vector<1x8x32xf32> to vector<8x32xf32>
    %c0_2 = arith.constant 0 : index
    %c0_3 = arith.constant 0 : index
    %c0_4 = arith.constant 0 : index
    %2 = vector.load %arg2[%c0_2, %c0_3, %c0_4] : memref<1x8x32xf32, #tpu.memory_space<vmem>>, vector<1x8x32xf32>
    %3 = vector.shape_cast %2 : vector<1x8x32xf32> to vector<8x32xf32>
    %c0_5 = arith.constant 0 : index
    %c0_6 = arith.constant 0 : index
    %4 = vector.load %arg3[%c0_5, %c0_6] : memref<9x16xf32, #tpu.memory_space<vmem>>, vector<9x16xf32>
    %c0_7 = arith.constant 0 : index
    %c0_8 = arith.constant 0 : index
    %5 = vector.load %arg4[%c0_7, %c0_8] : memref<32x16xf32, #tpu.memory_space<vmem>>, vector<32x16xf32>
    %cst = arith.constant dense<0.000000e+00> : vector<8x16xf32>
    %6 = tpu.matmul %1, %5, %cst {dimension_numbers = #tpu.dot_dimension_numbers<[1], [0], [0], [1], [0, 0, 1, 1], [], []>} : vector<8x32xf32>, vector<32x16xf32>, vector<8x16xf32> -> vector<8x16xf32>
    %c0_9 = arith.constant 0 : index
    %c0_10 = arith.constant 0 : index
    %7 = vector.load %arg5[%c0_9, %c0_10] : memref<32x32xf32, #tpu.memory_space<vmem>>, vector<32x32xf32>
    %cst_11 = arith.constant dense<0.000000e+00> : vector<8x32xf32>
    %8 = tpu.matmul %3, %7, %cst_11 {dimension_numbers = #tpu.dot_dimension_numbers<[1], [0], [0], [1], [0, 0, 1, 1], [], []>} : vector<8x32xf32>, vector<32x32xf32>, vector<8x32xf32> -> vector<8x32xf32>
    %c0_12 = arith.constant 0 : index
    %c0_13 = arith.constant 0 : index
    %9 = vector.load %arg7[%c0_12, %c0_13] : memref<1x16xf32, #tpu.memory_space<vmem>>, vector<1x16xf32>
    %10 = vector.broadcast %9 : vector<1x16xf32> to vector<8x16xf32>
    %11 = arith.addf %6, %10 : vector<8x16xf32>
    %cst_14 = arith.constant 0.353553385 : f32
    %12 = vector.broadcast %cst_14 : f32 to vector<8x16xf32>
    %13 = arith.mulf %11, %12 : vector<8x16xf32>
    %c0_15 = arith.constant 0 : index
    %c0_16 = arith.constant 0 : index
    %14 = vector.load %arg8[%c0_15, %c0_16] : memref<1x16xf32, #tpu.memory_space<vmem>>, vector<1x16xf32>
    %15 = vector.broadcast %14 : vector<1x16xf32> to vector<8x16xf32>
    %16 = arith.addf %6, %15 : vector<8x16xf32>
    %cst_17 = arith.constant 0.353553385 : f32
    %17 = vector.broadcast %cst_17 : f32 to vector<8x16xf32>
    %18 = arith.mulf %16, %17 : vector<8x16xf32>
    %19 = vector.extract_strided_slice %8 {offsets = [0, 0], sizes = [8, 8], strides = [1, 1]} : vector<8x32xf32> to vector<8x8xf32>
    %20 = vector.extract_strided_slice %8 {offsets = [0, 16], sizes = [8, 8], strides = [1, 1]} : vector<8x32xf32> to vector<8x8xf32>
    %21 = vector.extract_strided_slice %13 {offsets = [0, 0], sizes = [8, 8], strides = [1, 1]} : vector<8x16xf32> to vector<8x8xf32>
    %cst_18 = arith.constant dense<0.000000e+00> : vector<8x8xf32>
    %22 = tpu.matmul %21, %19, %cst_18 {dimension_numbers = #tpu.dot_dimension_numbers<[1], [1], [0], [0], [0, 0, 1, 0], [], []>} : vector<8x8xf32>, vector<8x8xf32>, vector<8x8xf32> -> vector<8x8xf32>
    %23 = vector.extract_strided_slice %18 {offsets = [0, 0], sizes = [8, 8], strides = [1, 1]} : vector<8x16xf32> to vector<8x8xf32>
    %24 = vector.extract_strided_slice %4 {offsets = [0, 0], sizes = [9, 8], strides = [1, 1]} : vector<9x16xf32> to vector<9x8xf32>
    %cst_19 = arith.constant dense<0.000000e+00> : vector<8x9xf32>
    %25 = tpu.matmul %23, %24, %cst_19 {dimension_numbers = #tpu.dot_dimension_numbers<[1], [1], [0], [0], [0, 0, 1, 0], [], []>} : vector<8x8xf32>, vector<9x8xf32>, vector<8x9xf32> -> vector<8x9xf32>
    %26 = vector.extract_strided_slice %25 {offsets = [0, 8], sizes = [1, 1], strides = [1, 1]} : vector<8x9xf32> to vector<1x1xf32>
    %27 = vector.extract_strided_slice %25 {offsets = [1, 0], sizes = [1, 7], strides = [1, 1]} : vector<8x9xf32> to vector<1x7xf32>
    %28 = tpu.concatenate %26, %27 in 1 : vector<1x1xf32>, vector<1x7xf32> -> vector<1x8xf32>
    %29 = vector.extract_strided_slice %25 {offsets = [1, 7], sizes = [1, 2], strides = [1, 1]} : vector<8x9xf32> to vector<1x2xf32>
    %30 = vector.extract_strided_slice %25 {offsets = [2, 0], sizes = [1, 6], strides = [1, 1]} : vector<8x9xf32> to vector<1x6xf32>
    %31 = tpu.concatenate %29, %30 in 1 : vector<1x2xf32>, vector<1x6xf32> -> vector<1x8xf32>
    %32 = vector.extract_strided_slice %25 {offsets = [2, 6], sizes = [1, 3], strides = [1, 1]} : vector<8x9xf32> to vector<1x3xf32>
    %33 = vector.extract_strided_slice %25 {offsets = [3, 0], sizes = [1, 5], strides = [1, 1]} : vector<8x9xf32> to vector<1x5xf32>
    %34 = tpu.concatenate %32, %33 in 1 : vector<1x3xf32>, vector<1x5xf32> -> vector<1x8xf32>
    %35 = vector.extract_strided_slice %25 {offsets = [3, 5], sizes = [1, 4], strides = [1, 1]} : vector<8x9xf32> to vector<1x4xf32>
    %36 = vector.extract_strided_slice %25 {offsets = [4, 0], sizes = [1, 4], strides = [1, 1]} : vector<8x9xf32> to vector<1x4xf32>
    %37 = tpu.concatenate %35, %36 in 1 : vector<1x4xf32>, vector<1x4xf32> -> vector<1x8xf32>
    %38 = vector.extract_strided_slice %25 {offsets = [4, 4], sizes = [1, 5], strides = [1, 1]} : vector<8x9xf32> to vector<1x5xf32>
    %39 = vector.extract_strided_slice %25 {offsets = [5, 0], sizes = [1, 3], strides = [1, 1]} : vector<8x9xf32> to vector<1x3xf32>
    %40 = tpu.concatenate %38, %39 in 1 : vector<1x5xf32>, vector<1x3xf32> -> vector<1x8xf32>
    %41 = vector.extract_strided_slice %25 {offsets = [5, 3], sizes = [1, 6], strides = [1, 1]} : vector<8x9xf32> to vector<1x6xf32>
    %42 = vector.extract_strided_slice %25 {offsets = [6, 0], sizes = [1, 2], strides = [1, 1]} : vector<8x9xf32> to vector<1x2xf32>
    %43 = tpu.concatenate %41, %42 in 1 : vector<1x6xf32>, vector<1x2xf32> -> vector<1x8xf32>
    %44 = vector.extract_strided_slice %25 {offsets = [6, 2], sizes = [1, 7], strides = [1, 1]} : vector<8x9xf32> to vector<1x7xf32>
    %45 = vector.extract_strided_slice %25 {offsets = [7, 0], sizes = [1, 1], strides = [1, 1]} : vector<8x9xf32> to vector<1x1xf32>
    %46 = tpu.concatenate %44, %45 in 1 : vector<1x7xf32>, vector<1x1xf32> -> vector<1x8xf32>
    %47 = vector.extract_strided_slice %25 {offsets = [7, 1], sizes = [1, 8], strides = [1, 1]} : vector<8x9xf32> to vector<1x8xf32>
    %48 = tpu.concatenate %28, %31, %34, %37, %40, %43, %46, %47 in 0 : vector<1x8xf32>, vector<1x8xf32>, vector<1x8xf32>, vector<1x8xf32>, vector<1x8xf32>, vector<1x8xf32>, vector<1x8xf32>, vector<1x8xf32> -> vector<8x8xf32>
    %49 = arith.addf %22, %48 : vector<8x8xf32>
    %cst_20 = arith.constant dense<0xFF800000> : vector<8xf32>
    %50 = vector.multi_reduction <maximumf>, %49, %cst_20 [1] : vector<8x8xf32> to vector<8xf32>
    %51 = vector.shape_cast %50 : vector<8xf32> to vector<8x1xf32>
    %52 = vector.broadcast %51 : vector<8x1xf32> to vector<8x8xf32>
    %53 = arith.subf %49, %52 : vector<8x8xf32>
    %54 = math.exp %53 : vector<8x8xf32>
    %cst_21 = arith.constant dense<0.000000e+00> : vector<8xf32>
    %55 = vector.multi_reduction <add>, %54, %cst_21 [1] : vector<8x8xf32> to vector<8xf32>
    %56 = vector.shape_cast %55 : vector<8xf32> to vector<8x1xf32>
    %57 = tpu.reciprocal %56 {approx = true} : vector<8x1xf32> -> vector<8x1xf32>
    %58 = vector.broadcast %57 : vector<8x1xf32> to vector<8x8xf32>
    %59 = arith.mulf %54, %58 : vector<8x8xf32>
    %cst_22 = arith.constant dense<0.000000e+00> : vector<8x8xf32>
    %60 = tpu.matmul %59, %20, %cst_22 {dimension_numbers = #tpu.dot_dimension_numbers<[1], [0], [0], [1], [0, 0, 1, 1], [], []>} : vector<8x8xf32>, vector<8x8xf32>, vector<8x8xf32> -> vector<8x8xf32>
    %61 = vector.extract_strided_slice %8 {offsets = [0, 8], sizes = [8, 8], strides = [1, 1]} : vector<8x32xf32> to vector<8x8xf32>
    %62 = vector.extract_strided_slice %8 {offsets = [0, 24], sizes = [8, 8], strides = [1, 1]} : vector<8x32xf32> to vector<8x8xf32>
    %63 = vector.extract_strided_slice %13 {offsets = [0, 8], sizes = [8, 8], strides = [1, 1]} : vector<8x16xf32> to vector<8x8xf32>
    %cst_23 = arith.constant dense<0.000000e+00> : vector<8x8xf32>
    %64 = tpu.matmul %63, %61, %cst_23 {dimension_numbers = #tpu.dot_dimension_numbers<[1], [1], [0], [0], [0, 0, 1, 0], [], []>} : vector<8x8xf32>, vector<8x8xf32>, vector<8x8xf32> -> vector<8x8xf32>
    %65 = vector.extract_strided_slice %18 {offsets = [0, 8], sizes = [8, 8], strides = [1, 1]} : vector<8x16xf32> to vector<8x8xf32>
    %66 = vector.extract_strided_slice %4 {offsets = [0, 8], sizes = [9, 8], strides = [1, 1]} : vector<9x16xf32> to vector<9x8xf32>
    %cst_24 = arith.constant dense<0.000000e+00> : vector<8x9xf32>
    %67 = tpu.matmul %65, %66, %cst_24 {dimension_numbers = #tpu.dot_dimension_numbers<[1], [1], [0], [0], [0, 0, 1, 0], [], []>} : vector<8x8xf32>, vector<9x8xf32>, vector<8x9xf32> -> vector<8x9xf32>
    %68 = vector.extract_strided_slice %67 {offsets = [0, 8], sizes = [1, 1], strides = [1, 1]} : vector<8x9xf32> to vector<1x1xf32>
    %69 = vector.extract_strided_slice %67 {offsets = [1, 0], sizes = [1, 7], strides = [1, 1]} : vector<8x9xf32> to vector<1x7xf32>
    %70 = tpu.concatenate %68, %69 in 1 : vector<1x1xf32>, vector<1x7xf32> -> vector<1x8xf32>
    %71 = vector.extract_strided_slice %67 {offsets = [1, 7], sizes = [1, 2], strides = [1, 1]} : vector<8x9xf32> to vector<1x2xf32>
    %72 = vector.extract_strided_slice %67 {offsets = [2, 0], sizes = [1, 6], strides = [1, 1]} : vector<8x9xf32> to vector<1x6xf32>
    %73 = tpu.concatenate %71, %72 in 1 : vector<1x2xf32>, vector<1x6xf32> -> vector<1x8xf32>
    %74 = vector.extract_strided_slice %67 {offsets = [2, 6], sizes = [1, 3], strides = [1, 1]} : vector<8x9xf32> to vector<1x3xf32>
    %75 = vector.extract_strided_slice %67 {offsets = [3, 0], sizes = [1, 5], strides = [1, 1]} : vector<8x9xf32> to vector<1x5xf32>
    %76 = tpu.concatenate %74, %75 in 1 : vector<1x3xf32>, vector<1x5xf32> -> vector<1x8xf32>
    %77 = vector.extract_strided_slice %67 {offsets = [3, 5], sizes = [1, 4], strides = [1, 1]} : vector<8x9xf32> to vector<1x4xf32>
    %78 = vector.extract_strided_slice %67 {offsets = [4, 0], sizes = [1, 4], strides = [1, 1]} : vector<8x9xf32> to vector<1x4xf32>
    %79 = tpu.concatenate %77, %78 in 1 : vector<1x4xf32>, vector<1x4xf32> -> vector<1x8xf32>
    %80 = vector.extract_strided_slice %67 {offsets = [4, 4], sizes = [1, 5], strides = [1, 1]} : vector<8x9xf32> to vector<1x5xf32>
    %81 = vector.extract_strided_slice %67 {offsets = [5, 0], sizes = [1, 3], strides = [1, 1]} : vector<8x9xf32> to vector<1x3xf32>
    %82 = tpu.concatenate %80, %81 in 1 : vector<1x5xf32>, vector<1x3xf32> -> vector<1x8xf32>
    %83 = vector.extract_strided_slice %67 {offsets = [5, 3], sizes = [1, 6], strides = [1, 1]} : vector<8x9xf32> to vector<1x6xf32>
    %84 = vector.extract_strided_slice %67 {offsets = [6, 0], sizes = [1, 2], strides = [1, 1]} : vector<8x9xf32> to vector<1x2xf32>
    %85 = tpu.concatenate %83, %84 in 1 : vector<1x6xf32>, vector<1x2xf32> -> vector<1x8xf32>
    %86 = vector.extract_strided_slice %67 {offsets = [6, 2], sizes = [1, 7], strides = [1, 1]} : vector<8x9xf32> to vector<1x7xf32>
    %87 = vector.extract_strided_slice %67 {offsets = [7, 0], sizes = [1, 1], strides = [1, 1]} : vector<8x9xf32> to vector<1x1xf32>
    %88 = tpu.concatenate %86, %87 in 1 : vector<1x7xf32>, vector<1x1xf32> -> vector<1x8xf32>
    %89 = vector.extract_strided_slice %67 {offsets = [7, 1], sizes = [1, 8], strides = [1, 1]} : vector<8x9xf32> to vector<1x8xf32>
    %90 = tpu.concatenate %70, %73, %76, %79, %82, %85, %88, %89 in 0 : vector<1x8xf32>, vector<1x8xf32>, vector<1x8xf32>, vector<1x8xf32>, vector<1x8xf32>, vector<1x8xf32>, vector<1x8xf32>, vector<1x8xf32> -> vector<8x8xf32>
    %91 = arith.addf %64, %90 : vector<8x8xf32>
    %cst_25 = arith.constant dense<0xFF800000> : vector<8xf32>
    %92 = vector.multi_reduction <maximumf>, %91, %cst_25 [1] : vector<8x8xf32> to vector<8xf32>
    %93 = vector.shape_cast %92 : vector<8xf32> to vector<8x1xf32>
    %94 = vector.broadcast %93 : vector<8x1xf32> to vector<8x8xf32>
    %95 = arith.subf %91, %94 : vector<8x8xf32>
    %96 = math.exp %95 : vector<8x8xf32>
    %cst_26 = arith.constant dense<0.000000e+00> : vector<8xf32>
    %97 = vector.multi_reduction <add>, %96, %cst_26 [1] : vector<8x8xf32> to vector<8xf32>
    %98 = vector.shape_cast %97 : vector<8xf32> to vector<8x1xf32>
    %99 = tpu.reciprocal %98 {approx = true} : vector<8x1xf32> -> vector<8x1xf32>
    %100 = vector.broadcast %99 : vector<8x1xf32> to vector<8x8xf32>
    %101 = arith.mulf %96, %100 : vector<8x8xf32>
    %cst_27 = arith.constant dense<0.000000e+00> : vector<8x8xf32>
    %102 = tpu.matmul %101, %62, %cst_27 {dimension_numbers = #tpu.dot_dimension_numbers<[1], [0], [0], [1], [0, 0, 1, 1], [], []>} : vector<8x8xf32>, vector<8x8xf32>, vector<8x8xf32> -> vector<8x8xf32>
    %103 = tpu.concatenate %60, %102 in 1 : vector<8x8xf32>, vector<8x8xf32> -> vector<8x16xf32>
    %c0_28 = arith.constant 0 : index
    %c0_29 = arith.constant 0 : index
    %104 = vector.load %arg6[%c0_28, %c0_29] : memref<16x32xf32, #tpu.memory_space<vmem>>, vector<16x32xf32>
    %cst_30 = arith.constant dense<0.000000e+00> : vector<8x32xf32>
    %105 = tpu.matmul %103, %104, %cst_30 {dimension_numbers = #tpu.dot_dimension_numbers<[1], [0], [0], [1], [0, 0, 1, 1], [], []>} : vector<8x16xf32>, vector<16x32xf32>, vector<8x32xf32> -> vector<8x32xf32>
    %106 = arith.addf %1, %105 : vector<8x32xf32>
    %cst_31 = arith.constant dense<0.000000e+00> : vector<8xf32>
    %107 = vector.multi_reduction <add>, %106, %cst_31 [1] : vector<8x32xf32> to vector<8xf32>
    %108 = vector.shape_cast %107 : vector<8xf32> to vector<8x1xf32>
    %cst_32 = arith.constant 3.200000e+01 : f32
    %109 = vector.broadcast %cst_32 : f32 to vector<8x1xf32>
    %110 = arith.divf %108, %109 : vector<8x1xf32>
    %111 = vector.broadcast %110 : vector<8x1xf32> to vector<8x32xf32>
    %112 = arith.subf %106, %111 : vector<8x32xf32>
    %113 = arith.mulf %112, %112 : vector<8x32xf32>
    %cst_33 = arith.constant dense<0.000000e+00> : vector<8xf32>
    %114 = vector.multi_reduction <add>, %113, %cst_33 [1] : vector<8x32xf32> to vector<8xf32>
    %115 = vector.shape_cast %114 : vector<8xf32> to vector<8x1xf32>
    %cst_34 = arith.constant 3.200000e+01 : f32
    %116 = vector.broadcast %cst_34 : f32 to vector<8x1xf32>
    %117 = arith.divf %115, %116 : vector<8x1xf32>
    %118 = vector.broadcast %110 : vector<8x1xf32> to vector<8x32xf32>
    %119 = arith.subf %106, %118 : vector<8x32xf32>
    %cst_35 = arith.constant 9.99999974E-6 : f32
    %120 = vector.broadcast %cst_35 : f32 to vector<8x1xf32>
    %121 = arith.addf %117, %120 : vector<8x1xf32>
    %122 = math.rsqrt %121 : vector<8x1xf32>
    %123 = vector.broadcast %122 : vector<8x1xf32> to vector<8x32xf32>
    %124 = arith.mulf %119, %123 : vector<8x32xf32>
    %c0_36 = arith.constant 0 : index
    %c0_37 = arith.constant 0 : index
    %125 = vector.load %arg9[%c0_36, %c0_37] : memref<1x32xf32, #tpu.memory_space<vmem>>, vector<1x32xf32>
    %126 = vector.broadcast %125 : vector<1x32xf32> to vector<8x32xf32>
    %127 = arith.mulf %124, %126 : vector<8x32xf32>
    %c0_38 = arith.constant 0 : index
    %c0_39 = arith.constant 0 : index
    %128 = vector.load %arg10[%c0_38, %c0_39] : memref<1x32xf32, #tpu.memory_space<vmem>>, vector<1x32xf32>
    %129 = vector.broadcast %128 : vector<1x32xf32> to vector<8x32xf32>
    %130 = arith.addf %127, %129 : vector<8x32xf32>
    %c0_40 = arith.constant 0 : index
    %c0_41 = arith.constant 0 : index
    %c0_42 = arith.constant 0 : index
    %131 = vector.load %arg11[%c0_40, %c0_41, %c0_42] : memref<1x8x32xf32, #tpu.memory_space<vmem>>, vector<1x8x32xf32>
    %132 = vector.shape_cast %131 : vector<1x8x32xf32> to vector<8x32xf32>
    %133 = vector.shape_cast %130 : vector<8x32xf32> to vector<1x8x32xf32>
    tpu.vector_store %arg11[%c0_40, %c0_41, %c0_42], %133 {strides = array<i32>} : memref<1x8x32xf32, #tpu.memory_space<vmem>>, vector<1x8x32xf32>,
    return
  }
  func.func @transform_0(%arg0: i32) -> (i32, i32, i32) {
    %c0_i32 = arith.constant 0 : i32
    %c0_i32_0 = arith.constant 0 : i32
    %c0_i32_1 = arith.constant 0 : i32
    return %arg0, %c0_i32, %c0_i32_0 : i32, i32, i32
  }
  func.func @transform_1(%arg0: i32) -> (i32, i32, i32) {
    %c0_i32 = arith.constant 0 : i32
    %c0_i32_0 = arith.constant 0 : i32
    %c0_i32_1 = arith.constant 0 : i32
    return %arg0, %c0_i32, %c0_i32_0 : i32, i32, i32
  }
  func.func @transform_2(%arg0: i32) -> (i32, i32) {
    %c0_i32 = arith.constant 0 : i32
    %c0_i32_0 = arith.constant 0 : i32
    %c0_i32_1 = arith.constant 0 : i32
    return %c0_i32, %c0_i32_0 : i32, i32
  }
  func.func @transform_3(%arg0: i32) -> (i32, i32) {
    %c0_i32 = arith.constant 0 : i32
    %c0_i32_0 = arith.constant 0 : i32
    %c0_i32_1 = arith.constant 0 : i32
    return %c0_i32, %c0_i32_0 : i32, i32
  }
  func.func @transform_4(%arg0: i32) -> (i32, i32) {
    %c0_i32 = arith.constant 0 : i32
    %c0_i32_0 = arith.constant 0 : i32
    %c0_i32_1 = arith.constant 0 : i32
    return %c0_i32, %c0_i32_0 : i32, i32
  }
  func.func @transform_5(%arg0: i32) -> (i32, i32) {
    %c0_i32 = arith.constant 0 : i32
    %c0_i32_0 = arith.constant 0 : i32
    %c0_i32_1 = arith.constant 0 : i32
    return %c0_i32, %c0_i32_0 : i32, i32
  }
  func.func @transform_6(%arg0: i32) -> (i32, i32) {
    %c0_i32 = arith.constant 0 : i32
    %c0_i32_0 = arith.constant 0 : i32
    %c0_i32_1 = arith.constant 0 : i32
    return %c0_i32, %c0_i32_0 : i32, i32
  }
  func.func @transform_7(%arg0: i32) -> (i32, i32) {
    %c0_i32 = arith.constant 0 : i32
    %c0_i32_0 = arith.constant 0 : i32
    %c0_i32_1 = arith.constant 0 : i32
    return %c0_i32, %c0_i32_0 : i32, i32
  }
  func.func @transform_8(%arg0: i32) -> (i32, i32) {
    %c0_i32 = arith.constant 0 : i32
    %c0_i32_0 = arith.constant 0 : i32
    %c0_i32_1 = arith.constant 0 : i32
    return %c0_i32, %c0_i32_0 : i32, i32
  }
  func.func @transform_9(%arg0: i32) -> (i32, i32) {
    %c0_i32 = arith.constant 0 : i32
    %c0_i32_0 = arith.constant 0 : i32
    %c0_i32_1 = arith.constant 0 : i32
    return %c0_i32, %c0_i32_0 : i32, i32
  }
  func.func @transform_10(%arg0: i32) -> (i32, i32, i32) {
    %c0_i32 = arith.constant 0 : i32
    %c0_i32_0 = arith.constant 0 : i32
    %c0_i32_1 = arith.constant 0 : i32
    return %arg0, %c0_i32, %c0_i32_0 : i32, i32, i32
  }
}

</mosaic_0001>

<llo_original>
// kernel: tpu_custom_call.1
$region0: #{tpu_custom_call.1}
  #allocation0 [shape = 'u32[]', space=smem, size = 0x4, offset = 0x4, fixed_abs, tag = 'smem constant byte address 0x4 - core index']
  #allocation1 [shape = 'u32[144,128]{1,0:T(1,128)}', space=vmem, size = 0x12000, scoped, tag = 'internal scratch']
  %s0 = inlined_call_operand.vmem [shape: f32[2,8,32], index: 0, kind: input, shape index: {}]
  %s1 = inlined_call_operand.hbm [shape: f32[2,8,32], index: 1, kind: input, shape index: {}]
  %s2 = inlined_call_operand.hbm [shape: f32[9,16], index: 2, kind: input, shape index: {}]
  %s3 = inlined_call_operand.vmem [shape: f32[32,16], index: 3, kind: input, shape index: {}]
  %s4 = inlined_call_operand.vmem [shape: f32[32,32], index: 4, kind: input, shape index: {}]
  %s5 = inlined_call_operand.vmem [shape: f32[16,32], index: 5, kind: input, shape index: {}]
  %s6 = inlined_call_operand.vmem [shape: f32[1,16], index: 6, kind: input, shape index: {}]
  %s7 = inlined_call_operand.vmem [shape: f32[1,16], index: 7, kind: input, shape index: {}]
  %s8 = inlined_call_operand.vmem [shape: f32[1,32], index: 8, kind: input, shape index: {}]
  %s9 = inlined_call_operand.vmem [shape: f32[1,32], index: 9, kind: input, shape index: {}]
  %s10 = inlined_call_operand.hbm [shape: f32[2,8,32], index: 10, kind: output, shape index: {}]
  %s11 = sld [smem:[#allocation0]]
  $region81: #{tpu_custom_call.1} parent=0
    _
  %s13 = ssub.s32 1, %s11
  %s14 = scalar_select 0, %s13, %s11
  $region1: #{tpu_custom_call.1} parent=0
    #allocation2 [shape = 'u8[8192]{0}', space=vmem, size = 0x2000, scoped, tag = 'input window, operand 1']
    #allocation3 [shape = 's32[2]{0}', space=sflag, size = 0x8, scoped, tag = 'scoped memory for tpu_custom_call.1']
    #allocation4 [shape = 's32[2]{0}', space=sflag, size = 0x8, scoped, tag = 'scoped memory for tpu_custom_call.1']
    #allocation5 [shape = 'u8[8192]{0}', space=vmem, size = 0x2000, scoped, tag = 'input window, operand 2, single buffered']
    #allocation6 [shape = 's32[1]{0}', space=sflag, size = 0x4, scoped, tag = 'scoped memory for tpu_custom_call.1']
    #allocation7 [shape = 'u8[8192]{0}', space=vmem, size = 0x2000, scoped, tag = 'output window, operand 0']
    %15 = vsyncpa [#allocation3], 0
    %s16 = scalar_lea.sflag [#allocation3], 1
    %17 = vsyncpa %s16, 0
    %18 = vsyncpa [#allocation6], 0
    %19 = vsyncpa [#allocation4], 0
    %s20 = scalar_lea.sflag [#allocation4], 1
    %21 = vsyncpa %s20, 0
    loop: start=0, step=1, limit=4
    $region2: #{tpu_custom_call.1} parent=1 // loop_pre_header
      _
    $region3: #{tpu_custom_call.1} parent=1 // loop_header
      %s23 = sphi 0, %s27
      %p24 = scmp.ge.s32.totalorder %s23, 4
      %s33 = sphi 0, %s35
      %s36 = sphi 0, %s33
      %s37 = sphi 0, %s36
      %s53 = sphi 0, %s37
      %s59 = sphi 0, %s61
      %s62 = sphi 0, %s59
      %s63 = sphi 0, %s62
      %s79 = sphi 0, %s63
      %s83 = sphi 0, %s83
      %s85 = sphi 0, %s83
      %s86 = sphi 0, %s85
      %s100 = sphi 0, %s86
      %s104 = sphi 0, %s104
      %s106 = sphi 0, %s104
      %s107 = sphi 0, %s106
      %s121 = sphi 0, %s107
      %s125 = sphi 0, %s125
      %s127 = sphi 0, %s125
      %s128 = sphi 0, %s127
      %s142 = sphi 0, %s128
      %s146 = sphi 0, %s146
      %s148 = sphi 0, %s146
      %s149 = sphi 0, %s148
      %s163 = sphi 0, %s149
      %s167 = sphi 0, %s167
      %s169 = sphi 0, %s167
      %s170 = sphi 0, %s169
      %s184 = sphi 0, %s170
      %s188 = sphi 0, %s188
      %s190 = sphi 0, %s188
      %s191 = sphi 0, %s190
      %s205 = sphi 0, %s191
      %s209 = sphi 0, %s209
      %s211 = sphi 0, %s209
      %s212 = sphi 0, %s211
      %s226 = sphi 0, %s212
      %s230 = sphi 0, %s230
      %s232 = sphi 0, %s230
      %s233 = sphi 0, %s232
      %s247 = sphi 0, %s233
      %s253 = sphi 0, %s255
      %s256 = sphi 0, %s253
      %s257 = sphi 0, %s256
      %s273 = sphi 0, %s257
    $region4: #{tpu_custom_call.1} parent=1 // loop_header_branch
      %26 = sbr.rel (%p24) target = $region8
    $region5: #{tpu_custom_call.1} parent=1 // loop_body
      %s28 = ssub.s32 %s23, 1
      %s29 = ssub.s32 %s23, 2
      %s30 = sadd.s32 %s23, 1
      %s31 = ssub.s32 %s23, %s30
      %p32 = scmp.eq.s32.totalorder %s31, 0
      %s34 = sadd.s32 %s33, 1
      %s35 = scalar_select %p32, %s33, %s34
      %p38 = pneg %p32
      %p39 = scmp.eq.s32.totalorder %s23, 1
      %p40 = por %p38, %p39
      %p41 = scmp.ne.s32.totalorder %s33, %s36
      %p42 = scmp.eq.s32.totalorder %s23, 0
      %p43 = por %p41, %p42
      %p44 = scmp.ne.s32.totalorder %s33, %s36
      %p45 = scmp.eq.s32.totalorder %s28, 1
      %p46 = por %p44, %p45
      %p47 = scmp.ne.s32.totalorder %s36, %s37
      %p48 = scmp.eq.s32.totalorder %s28, 0
      %p49 = por %p47, %p48
      %p50 = scmp.ne.s32.totalorder %s36, %s37
      %p51 = scmp.eq.s32.totalorder %s29, 1
      %p52 = por %p50, %p51
      %p54 = scmp.ne.s32.totalorder %s37, %s53
      %p55 = scmp.eq.s32.totalorder %s29, 0
      %p56 = por %p54, %p55
      %s57 = ssub.s32 %s23, %s30
      %p58 = scmp.eq.s32.totalorder %s57, 0
      %s60 = sadd.s32 %s59, 1
      %s61 = scalar_select %p58, %s59, %s60
      %p64 = pneg %p58
      %p65 = scmp.eq.s32.totalorder %s23, 1
      %p66 = por %p64, %p65
      %p67 = scmp.ne.s32.totalorder %s59, %s62
      %p68 = scmp.eq.s32.totalorder %s23, 0
      %p69 = por %p67, %p68
      %p70 = scmp.ne.s32.totalorder %s59, %s62
      %p71 = scmp.eq.s32.totalorder %s28, 1
      %p72 = por %p70, %p71
      %p73 = scmp.ne.s32.totalorder %s62, %s63
      %p74 = scmp.eq.s32.totalorder %s28, 0
      %p75 = por %p73, %p74
      %p76 = scmp.ne.s32.totalorder %s62, %s63
      %p77 = scmp.eq.s32.totalorder %s29, 1
      %p78 = por %p76, %p77
      %p80 = scmp.ne.s32.totalorder %s63, %s79
      %p81 = scmp.eq.s32.totalorder %s29, 0
      %p82 = por %p80, %p81
      %s84 = sadd.s32 %s83, 1
      %p87 = scmp.eq.s32.totalorder %s23, 1
      %p88 = scmp.ne.s32.totalorder %s83, %s85
      %p89 = scmp.eq.s32.totalorder %s23, 0
      %p90 = por %p88, %p89
      %p91 = scmp.ne.s32.totalorder %s83, %s85
      %p92 = scmp.eq.s32.totalorder %s28, 1
      %p93 = por %p91, %p92
      %p94 = scmp.ne.s32.totalorder %s85, %s86
      %p95 = scmp.eq.s32.totalorder %s28, 0
      %p96 = por %p94, %p95
      %p97 = scmp.ne.s32.totalorder %s85, %s86
      %p98 = scmp.eq.s32.totalorder %s29, 1
      %p99 = por %p97, %p98
      %p101 = scmp.ne.s32.totalorder %s86, %s100
      %p102 = scmp.eq.s32.totalorder %s29, 0
      %p103 = por %p101, %p102
      %s105 = sadd.s32 %s104, 1
      %p108 = scmp.eq.s32.totalorder %s23, 1
      %p109 = scmp.ne.s32.totalorder %s104, %s106
      %p110 = scmp.eq.s32.totalorder %s23, 0
      %p111 = por %p109, %p110
      %p112 = scmp.ne.s32.totalorder %s104, %s106
      %p113 = scmp.eq.s32.totalorder %s28, 1
      %p114 = por %p112, %p113
      %p115 = scmp.ne.s32.totalorder %s106, %s107
      %p116 = scmp.eq.s32.totalorder %s28, 0
      %p117 = por %p115, %p116
      %p118 = scmp.ne.s32.totalorder %s106, %s107
      %p119 = scmp.eq.s32.totalorder %s29, 1
      %p120 = por %p118, %p119
      %p122 = scmp.ne.s32.totalorder %s107, %s121
      %p123 = scmp.eq.s32.totalorder %s29, 0
      %p124 = por %p122, %p123
      %s126 = sadd.s32 %s125, 1
      %p129 = scmp.eq.s32.totalorder %s23, 1
      %p130 = scmp.ne.s32.totalorder %s125, %s127
      %p131 = scmp.eq.s32.totalorder %s23, 0
      %p132 = por %p130, %p131
      %p133 = scmp.ne.s32.totalorder %s125, %s127
      %p134 = scmp.eq.s32.totalorder %s28, 1
      %p135 = por %p133, %p134
      %p136 = scmp.ne.s32.totalorder %s127, %s128
      %p137 = scmp.eq.s32.totalorder %s28, 0
      %p138 = por %p136, %p137
      %p139 = scmp.ne.s32.totalorder %s127, %s128
      %p140 = scmp.eq.s32.totalorder %s29, 1
      %p141 = por %p139, %p140
      %p143 = scmp.ne.s32.totalorder %s128, %s142
      %p144 = scmp.eq.s32.totalorder %s29, 0
      %p145 = por %p143, %p144
      %s147 = sadd.s32 %s146, 1
      %p150 = scmp.eq.s32.totalorder %s23, 1
      %p151 = scmp.ne.s32.totalorder %s146, %s148
      %p152 = scmp.eq.s32.totalorder %s23, 0
      %p153 = por %p151, %p152
      %p154 = scmp.ne.s32.totalorder %s146, %s148
      %p155 = scmp.eq.s32.totalorder %s28, 1
      %p156 = por %p154, %p155
      %p157 = scmp.ne.s32.totalorder %s148, %s149
      %p158 = scmp.eq.s32.totalorder %s28, 0
      %p159 = por %p157, %p158
      %p160 = scmp.ne.s32.totalorder %s148, %s149
      %p161 = scmp.eq.s32.totalorder %s29, 1
      %p162 = por %p160, %p161
      %p164 = scmp.ne.s32.totalorder %s149, %s163
      %p165 = scmp.eq.s32.totalorder %s29, 0
      %p166 = por %p164, %p165
      %s168 = sadd.s32 %s167, 1
      %p171 = scmp.eq.s32.totalorder %s23, 1
      %p172 = scmp.ne.s32.totalorder %s167, %s169
      %p173 = scmp.eq.s32.totalorder %s23, 0
      %p174 = por %p172, %p173
      %p175 = scmp.ne.s32.totalorder %s167, %s169
      %p176 = scmp.eq.s32.totalorder %s28, 1
      %p177 = por %p175, %p176
      %p178 = scmp.ne.s32.totalorder %s169, %s170
      %p179 = scmp.eq.s32.totalorder %s28, 0
      %p180 = por %p178, %p179
      %p181 = scmp.ne.s32.totalorder %s169, %s170
      %p182 = scmp.eq.s32.totalorder %s29, 1
      %p183 = por %p181, %p182
      %p185 = scmp.ne.s32.totalorder %s170, %s184
      %p186 = scmp.eq.s32.totalorder %s29, 0
      %p187 = por %p185, %p186
      %s189 = sadd.s32 %s188, 1
      %p192 = scmp.eq.s32.totalorder %s23, 1
      %p193 = scmp.ne.s32.totalorder %s188, %s190
      %p194 = scmp.eq.s32.totalorder %s23, 0
      %p195 = por %p193, %p194
      %p196 = scmp.ne.s32.totalorder %s188, %s190
      %p197 = scmp.eq.s32.totalorder %s28, 1
      %p198 = por %p196, %p197
      %p199 = scmp.ne.s32.totalorder %s190, %s191
      %p200 = scmp.eq.s32.totalorder %s28, 0
      %p201 = por %p199, %p200
      %p202 = scmp.ne.s32.totalorder %s190, %s191
      %p203 = scmp.eq.s32.totalorder %s29, 1
      %p204 = por %p202, %p203
      %p206 = scmp.ne.s32.totalorder %s191, %s205
      %p207 = scmp.eq.s32.totalorder %s29, 0
      %p208 = por %p206, %p207
      %s210 = sadd.s32 %s209, 1
      %p213 = scmp.eq.s32.totalorder %s23, 1
      %p214 = scmp.ne.s32.totalorder %s209, %s211
      %p215 = scmp.eq.s32.totalorder %s23, 0
      %p216 = por %p214, %p215
      %p217 = scmp.ne.s32.totalorder %s209, %s211
      %p218 = scmp.eq.s32.totalorder %s28, 1
      %p219 = por %p217, %p218
      %p220 = scmp.ne.s32.totalorder %s211, %s212
      %p221 = scmp.eq.s32.totalorder %s28, 0
      %p222 = por %p220, %p221
      %p223 = scmp.ne.s32.totalorder %s211, %s212
      %p224 = scmp.eq.s32.totalorder %s29, 1
      %p225 = por %p223, %p224
      %p227 = scmp.ne.s32.totalorder %s212, %s226
      %p228 = scmp.eq.s32.totalorder %s29, 0
      %p229 = por %p227, %p228
      %s231 = sadd.s32 %s230, 1
      %p234 = scmp.eq.s32.totalorder %s23, 1
      %p235 = scmp.ne.s32.totalorder %s230, %s232
      %p236 = scmp.eq.s32.totalorder %s23, 0
      %p237 = por %p235, %p236
      %p238 = scmp.ne.s32.totalorder %s230, %s232
      %p239 = scmp.eq.s32.totalorder %s28, 1
      %p240 = por %p238, %p239
      %p241 = scmp.ne.s32.totalorder %s232, %s233
      %p242 = scmp.eq.s32.totalorder %s28, 0
      %p243 = por %p241, %p242
      %p244 = scmp.ne.s32.totalorder %s232, %s233
      %p245 = scmp.eq.s32.totalorder %s29, 1
      %p246 = por %p244, %p245
      %p248 = scmp.ne.s32.totalorder %s233, %s247
      %p249 = scmp.eq.s32.totalorder %s29, 0
      %p250 = por %p248, %p249
      %s251 = ssub.s32 %s23, %s30
      %p252 = scmp.eq.s32.totalorder %s251, 0
      %s254 = sadd.s32 %s253, 1
      %s255 = scalar_select %p252, %s253, %s254
      %p258 = pneg %p252
      %p259 = scmp.eq.s32.totalorder %s23, 1
      %p260 = por %p258, %p259
      %p261 = scmp.ne.s32.totalorder %s253, %s256
      %p262 = scmp.eq.s32.totalorder %s23, 0
      %p263 = por %p261, %p262
      %p264 = scmp.ne.s32.totalorder %s253, %s256
      %p265 = scmp.eq.s32.totalorder %s28, 1
      %p266 = por %p264, %p265
      %p267 = scmp.ne.s32.totalorder %s256, %s257
      %p268 = scmp.eq.s32.totalorder %s28, 0
      %p269 = por %p267, %p268
      %p270 = scmp.ne.s32.totalorder %s256, %s257
      %p271 = scmp.eq.s32.totalorder %s29, 1
      %p272 = por %p270, %p271
      %p274 = scmp.ne.s32.totalorder %s257, %s273
      %p275 = scmp.eq.s32.totalorder %s29, 0
      %p276 = por %p274, %p275
      %p277 = scmp.le.s32.totalorder 1, %s23
      %p278 = scmp.lt.s32.totalorder %s23, 3
      %p279 = pnand %p277, %p278
      %p280 = pneg %p279
      // Predicated region
      $region9: #{tpu_custom_call.1} parent=5 // pred_check
        _
      $region10: #{tpu_custom_call.1} parent=5 // pred_check_branch
        %282 = sbr.rel (%p279) target = $region12
      $region11: #{tpu_custom_call.1} parent=5 // pred_region
        %s283 = ssub.s32 %s23, 1
        // Predicated region
        $region13: #{tpu_custom_call.1} parent=11 // pred_check
          %p284 = pneg %p96
        $region14: #{tpu_custom_call.1} parent=11 // pred_check_branch
          %286 = sbr.rel (%p284) target = $region16
        $region15: #{tpu_custom_call.1} parent=11 // pred_region
          %s288 = ssub.s32 256, 256
          %289 = vsyncadd [#allocation6], %s288
          %s290 = sshll.u32 [#allocation5], 4
          %s291 = int_to_ptr.vmem [resolvable:$true] %s290
          %296 = dma.hbm_to_vmem [thread:$0]  %s2, 256, %s291, [#allocation6], 128, 128, 8
        $region16: #{tpu_custom_call.1} parent=11 // pred_fallthru
          _
        // Predicated region
        $region17: #{tpu_custom_call.1} parent=11 // pred_check
          %p297 = pneg %p117
        $region18: #{tpu_custom_call.1} parent=11 // pred_check_branch
          %299 = sbr.rel (%p297) target = $region20
        $region19: #{tpu_custom_call.1} parent=11 // pred_region
          _
        $region20: #{tpu_custom_call.1} parent=11 // pred_fallthru
          _
        // Predicated region
        $region21: #{tpu_custom_call.1} parent=11 // pred_check
          %p300 = pneg %p138
        $region22: #{tpu_custom_call.1} parent=11 // pred_check_branch
          %302 = sbr.rel (%p300) target = $region24
        $region23: #{tpu_custom_call.1} parent=11 // pred_region
          _
        $region24: #{tpu_custom_call.1} parent=11 // pred_fallthru
          _
        // Predicated region
        $region25: #{tpu_custom_call.1} parent=11 // pred_check
          %p303 = pneg %p159
        $region26: #{tpu_custom_call.1} parent=11 // pred_check_branch
          %305 = sbr.rel (%p303) target = $region28
        $region27: #{tpu_custom_call.1} parent=11 // pred_region
          _
        $region28: #{tpu_custom_call.1} parent=11 // pred_fallthru
          _
        // Predicated region
        $region29: #{tpu_custom_call.1} parent=11 // pred_check
          %p306 = pneg %p180
        $region30: #{tpu_custom_call.1} parent=11 // pred_check_branch
          %308 = sbr.rel (%p306) target = $region32
        $region31: #{tpu_custom_call.1} parent=11 // pred_region
          _
        $region32: #{tpu_custom_call.1} parent=11 // pred_fallthru
          _
        // Predicated region
        $region33: #{tpu_custom_call.1} parent=11 // pred_check
          %p309 = pneg %p201
        $region34: #{tpu_custom_call.1} parent=11 // pred_check_branch
          %311 = sbr.rel (%p309) target = $region36
        $region35: #{tpu_custom_call.1} parent=11 // pred_region
          _
        $region36: #{tpu_custom_call.1} parent=11 // pred_fallthru
          _
        // Predicated region
        $region37: #{tpu_custom_call.1} parent=11 // pred_check
          %p312 = pneg %p222
        $region38: #{tpu_custom_call.1} parent=11 // pred_check_branch
          %314 = sbr.rel (%p312) target = $region40
        $region39: #{tpu_custom_call.1} parent=11 // pred_region
          _
        $region40: #{tpu_custom_call.1} parent=11 // pred_fallthru
          _
        // Predicated region
        $region41: #{tpu_custom_call.1} parent=11 // pred_check
          %p315 = pneg %p243
        $region42: #{tpu_custom_call.1} parent=11 // pred_check_branch
          %317 = sbr.rel (%p315) target = $region44
        $region43: #{tpu_custom_call.1} parent=11 // pred_region
          _
        $region44: #{tpu_custom_call.1} parent=11 // pred_fallthru
          _
      $region12: #{tpu_custom_call.1} parent=5 // pred_fallthru
        _
      %p318 = scmp.lt.s32.totalorder %s23, 2
      // Predicated region
      $region45: #{tpu_custom_call.1} parent=5 // pred_check
        %p319 = pneg %p318
      $region46: #{tpu_custom_call.1} parent=5 // pred_check_branch
        %321 = sbr.rel (%p319) target = $region48
      $region47: #{tpu_custom_call.1} parent=5 // pred_region
        // Predicated region
        $region49: #{tpu_custom_call.1} parent=47 // pred_check
          %p322 = pneg %p43
        $region50: #{tpu_custom_call.1} parent=47 // pred_check_branch
          %324 = sbr.rel (%p322) target = $region52
        $region51: #{tpu_custom_call.1} parent=47 // pred_region
          %p325 = scmp.lt.s32.totalorder %s23, 1
          %s326 = scalar_select %p325, %s23, 1
          %s327 = smul.addr %s326, 8
          %s328 = scalar_lea.vmem %s0, %s327
        $region52: #{tpu_custom_call.1} parent=47 // pred_fallthru
          _
        // Predicated region
        $region53: #{tpu_custom_call.1} parent=47 // pred_check
          %p329 = pneg %p69
        $region54: #{tpu_custom_call.1} parent=47 // pred_check_branch
          %331 = sbr.rel (%p329) target = $region56
        $region55: #{tpu_custom_call.1} parent=47 // pred_region
          %s332 = sand.u32 %s59, 1
          %s333 = scalar_lea.sflag [#allocation3], %s332
          %s334 = sand.u32 %s59, 1
          %s335 = smul.addr %s334, 8
          %s336 = scalar_lea.vmem [#allocation2], %s335
          %s338 = ssub.s32 128, 128
          %339 = vsyncadd %s333, %s338
          %s340 = smul.addr %s23, 128
          %s341 = scalar_lea.hbm %s1, %s340
          %s343 = sshll.u32 %s336, 4
          %s344 = int_to_ptr.vmem [resolvable:$true] %s343
          %346 = dma.hbm_to_vmem [thread:$0]  %s341, 128, %s344, %s333
        $region56: #{tpu_custom_call.1} parent=47 // pred_fallthru
          _
      $region48: #{tpu_custom_call.1} parent=5 // pred_fallthru
        _
      %p347 = scmp.le.s32.totalorder 1, %s23
      %p348 = scmp.lt.s32.totalorder %s23, 3
      %p349 = pnand %p347, %p348
      %p350 = pneg %p349
      // Predicated region
      $region57: #{tpu_custom_call.1} parent=5 // pred_check
        _
      $region58: #{tpu_custom_call.1} parent=5 // pred_check_branch
        %352 = sbr.rel (%p349) target = $region60
      $region59: #{tpu_custom_call.1} parent=5 // pred_region
        %s353 = ssub.s32 %s23, 1
        %s354 = sand.u32 %s62, 1
        %s355 = scalar_lea.sflag [#allocation3], %s354
        %s356 = sand.u32 %s62, 1
        %s357 = smul.addr %s356, 8
        %s358 = scalar_lea.vmem [#allocation2], %s357
        // Predicated region
        $region61: #{tpu_custom_call.1} parent=59 // pred_check
          %p359 = pneg %p75
        $region62: #{tpu_custom_call.1} parent=59 // pred_check_branch
          %361 = sbr.rel (%p359) target = $region64
        $region63: #{tpu_custom_call.1} parent=59 // pred_region
          %362 = dma.done %s355, 128
        $region64: #{tpu_custom_call.1} parent=59 // pred_fallthru
          _
        // Predicated region
        $region65: #{tpu_custom_call.1} parent=59 // pred_check
          %p363 = pneg %p96
        $region66: #{tpu_custom_call.1} parent=59 // pred_check_branch
          %365 = sbr.rel (%p363) target = $region68
        $region67: #{tpu_custom_call.1} parent=59 // pred_region
          %366 = dma.done [#allocation6], 256
        $region68: #{tpu_custom_call.1} parent=59 // pred_fallthru
          _
        %p367 = scmp.lt.s32.totalorder %s28, 1
        %s368 = scalar_select %p367, %s28, 1
        %s369 = smul.addr %s368, 8
        %s370 = scalar_lea.vmem %s0, %s369
        %p371 = pneg %p49
        %p372 = pneg %p46
        %s373 = sand.u32 %s62, 1
        %s374 = scalar_lea.sflag [#allocation3], %s373
        %s375 = sand.u32 %s62, 1
        %s376 = smul.addr %s375, 8
        %s377 = scalar_lea.vmem [#allocation2], %s376
        %p378 = pneg %p75
        %p379 = pneg %p72
        %p380 = pneg %p96
        %p381 = pneg %p93
        %p382 = pneg %p117
        %p383 = pneg %p114
        %p384 = pneg %p138
        %p385 = pneg %p135
        %p386 = pneg %p159
        %p387 = pneg %p156
        %p388 = pneg %p180
        %p389 = pneg %p177
        %p390 = pneg %p201
        %p391 = pneg %p198
        %p392 = pneg %p222
        %p393 = pneg %p219
        %p394 = pneg %p243
        %p395 = pneg %p240
        %p396 = pneg %p269
        %p397 = pneg %p266
        %s398 = sand.u32 %s256, 1
        %s399 = scalar_lea.sflag [#allocation4], %s398
        %s400 = sand.u32 %s256, 1
        %s401 = smul.addr %s400, 8
        %s402 = scalar_lea.vmem [#allocation7], %s401
        %p403 = scmp.lt.s32.totalorder %s28, 1
        %s404 = scalar_select %p403, %s28, 1
        %s405 = smul.addr %s404, 8
        %s406 = scalar_lea.vmem %s0, %s405
        %v407 = vld [vmem:[%s406] sm:$0xff]
        %v408 = vld [vmem:[%s358] sm:$0xff]
        %v409 = vld [vmem:[#allocation5] sm:$0xff]
        %v410 = vld [vmem:[#allocation5 + $0x8] sm:$0x1]
        %v411 = vld [vmem:[%s3] sm:$0xff]
        %v412 = vld [vmem:[%s3 + $0x8] sm:$0xff]
        %v413 = vld [vmem:[%s3 + $0x10] sm:$0xff]
        %v414 = vld [vmem:[%s3 + $0x18] sm:$0xff]
        %vm415 = vcmask 261120
        %v417 = vsel %vm415, %v407, 0
        %419 = vmatprep.subr.mxu0 0.0
        %420 = vmatpush1.msra.mxu0 %v411
        %421 = vmatprep.subr.mxu0 0.0
        %422 = vmatpush1.msra.mxu0 %v412
        %423 = vmatprep.subr.mxu0 0.0
        %424 = vmatpush1.msra.mxu0 %v413
        %425 = vmatprep.subr.mxu0 0.0
        %426 = vmatpush1.msra.mxu0 %v414
        %427 = vmatprep.subr.mxu0 0.0
        %428 = vmatpush1.msra.mxu0 0.0
        %429 = vmatprep.subr.mxu0 0.0
        %430 = vmatpush1.msra.mxu0 0.0
        %431 = vmatprep.subr.mxu0 0.0
        %432 = vmatpush1.msra.mxu0 0.0
        %433 = vmatprep.subr.mxu0 0.0
        %434 = vmatpush1.msra.mxu0 0.0
        %435 = vmatprep.subr.mxu0 0.0
        %436 = vmatpush1.msra.mxu0 0.0
        %437 = vmatprep.subr.mxu0 0.0
        %438 = vmatpush1.msra.mxu0 0.0
        %439 = vmatprep.subr.mxu0 0.0
        %440 = vmatpush1.msra.mxu0 0.0
        %441 = vmatprep.subr.mxu0 0.0
        %442 = vmatpush1.msra.mxu0 0.0
        %443 = vmatprep.subr.mxu0 0.0
        %444 = vmatpush1.msra.mxu0 0.0
        %445 = vmatprep.subr.mxu0 0.0
        %446 = vmatpush1.msra.mxu0 0.0
        %447 = vmatprep.subr.mxu0 0.0
        %448 = vmatpush1.msra.mxu0 0.0
        %449 = vmatprep.subr.mxu0 0.0
        %450 = vmatpush1.msra.mxu0 0.0
        %451 = vmatprep.subr.mxu0 0.0
        %452 = vmatpush1.msra.mxu0 0.0
        %453 = vmatprep.subr.mxu0 0.0
        %454 = vmatpush1.msra.mxu0 0.0
        %455 = vmatprep.subr.mxu0 0.0
        %456 = vmatpush1.msra.mxu0 0.0
        %457 = vmatprep.subr.mxu0 0.0
        %458 = vmatpush1.msra.mxu0 0.0
        %459 = vmatprep.subr.mxu0 0.0
        %460 = vmatpush1.msra.mxu0 0.0
        %461 = vmatprep.subr.mxu0 0.0
        %462 = vmatpush1.msra.mxu0 0.0
        %463 = vmatprep.subr.mxu0 0.0
        %464 = vmatpush1.msra.mxu0 0.0
        %465 = vmatprep.subr.mxu0 0.0
        %466 = vmatpush1.msra.mxu0 0.0
        %467 = vmatprep.subr.mxu0 0.0
        %468 = vmatpush1.msra.mxu0 0.0
        %469 = vmatprep.subr.mxu0 0.0
        %470 = vmatpush1.msra.mxu0 0.0
        %471 = vmatprep.subr.mxu0 0.0
        %472 = vmatpush1.msra.mxu0 0.0
        %473 = vmatprep.subr.mxu0 0.0
        %474 = vmatpush1.msra.mxu0 0.0
        %475 = vmatprep.subr.mxu0 0.0
        %476 = vmatpush1.msra.mxu0 0.0
        %477 = vmatprep.subr.mxu0 0.0
        %478 = vmatpush1.msra.mxu0 0.0
        %479 = vmatprep.subr.mxu0 0.0
        %480 = vmatpush1.msra.mxu0 0.0
        %481 = vmatprep.subr.mxu0 0.0
        %482 = vmatpush1.msra.mxu0 0.0
        %483 = vmatprep.mubr.f32.mxu0 0.0
        %484 = vmatmul.mubr.f32.gmra.mrb[0].mxu0 %v417
        %v485 = vpop.f32.mrb[0].mxu0
        %v486 = vadd.f32 0.0, %v485
        %v487 = vpop.f32.mrb[0].mxu0
        %488 = vdwg.mxu0
        %v489 = vld [vmem:[%s4] sm:$0xff]
        %v490 = vld [vmem:[%s4 + $0x8] sm:$0xff]
        %v491 = vld [vmem:[%s4 + $0x10] sm:$0xff]
        %v492 = vld [vmem:[%s4 + $0x18] sm:$0xff]
        %v494 = vsel %vm415, %v408, 0
        %496 = vmatprep.subr.mxu0 0.0
        %497 = vmatpush1.msra.mxu0 %v489
        %498 = vmatprep.subr.mxu0 0.0
        %499 = vmatpush1.msra.mxu0 %v490
        %500 = vmatprep.subr.mxu0 0.0
        %501 = vmatpush1.msra.mxu0 %v491
        %502 = vmatprep.subr.mxu0 0.0
        %503 = vmatpush1.msra.mxu0 %v492
        %504 = vmatprep.subr.mxu0 0.0
        %505 = vmatpush1.msra.mxu0 0.0
        %506 = vmatprep.subr.mxu0 0.0
        %507 = vmatpush1.msra.mxu0 0.0
        %508 = vmatprep.subr.mxu0 0.0
        %509 = vmatpush1.msra.mxu0 0.0
        %510 = vmatprep.subr.mxu0 0.0
        %511 = vmatpush1.msra.mxu0 0.0
        %512 = vmatprep.subr.mxu0 0.0
        %513 = vmatpush1.msra.mxu0 0.0
        %514 = vmatprep.subr.mxu0 0.0
        %515 = vmatpush1.msra.mxu0 0.0
        %516 = vmatprep.subr.mxu0 0.0
        %517 = vmatpush1.msra.mxu0 0.0
        %518 = vmatprep.subr.mxu0 0.0
        %519 = vmatpush1.msra.mxu0 0.0
        %520 = vmatprep.subr.mxu0 0.0
        %521 = vmatpush1.msra.mxu0 0.0
        %522 = vmatprep.subr.mxu0 0.0
        %523 = vmatpush1.msra.mxu0 0.0
        %524 = vmatprep.subr.mxu0 0.0
        %525 = vmatpush1.msra.mxu0 0.0
        %526 = vmatprep.subr.mxu0 0.0
        %527 = vmatpush1.msra.mxu0 0.0
        %528 = vmatprep.subr.mxu0 0.0
        %529 = vmatpush1.msra.mxu0 0.0
        %530 = vmatprep.subr.mxu0 0.0
        %531 = vmatpush1.msra.mxu0 0.0
        %532 = vmatprep.subr.mxu0 0.0
        %533 = vmatpush1.msra.mxu0 0.0
        %534 = vmatprep.subr.mxu0 0.0
        %535 = vmatpush1.msra.mxu0 0.0
        %536 = vmatprep.subr.mxu0 0.0
        %537 = vmatpush1.msra.mxu0 0.0
        %538 = vmatprep.subr.mxu0 0.0
        %539 = vmatpush1.msra.mxu0 0.0
        %540 = vmatprep.subr.mxu0 0.0
        %541 = vmatpush1.msra.mxu0 0.0
        %542 = vmatprep.subr.mxu0 0.0
        %543 = vmatpush1.msra.mxu0 0.0
        %544 = vmatprep.subr.mxu0 0.0
        %545 = vmatpush1.msra.mxu0 0.0
        %546 = vmatprep.subr.mxu0 0.0
        %547 = vmatpush1.msra.mxu0 0.0
        %548 = vmatprep.subr.mxu0 0.0
        %549 = vmatpush1.msra.mxu0 0.0
        %550 = vmatprep.subr.mxu0 0.0
        %551 = vmatpush1.msra.mxu0 0.0
        %552 = vmatprep.subr.mxu0 0.0
        %553 = vmatpush1.msra.mxu0 0.0
        %554 = vmatprep.subr.mxu0 0.0
        %555 = vmatpush1.msra.mxu0 0.0
        %556 = vmatprep.subr.mxu0 0.0
        %557 = vmatpush1.msra.mxu0 0.0
        %558 = vmatprep.subr.mxu0 0.0
        %559 = vmatpush1.msra.mxu0 0.0
        %560 = vmatprep.mubr.f32.mxu0 0.0
        %561 = vmatmul.mubr.f32.gmra.mrb[0].mxu0 %v494
        %v562 = vpop.f32.mrb[0].mxu0
        %v563 = vadd.f32 0.0, %v562
        %v564 = vpop.f32.mrb[0].mxu0
        %565 = vdwg.mxu0
        %v566 = vld [vmem:[%s6] sm:$0x1]
        %v568 = vlaneseq
        %v569 = vshrl.u32 %v568, 7
        %v570 = vsub.s32 0, %v569
        %v571 = vrot.slane %v566, %v570
        %v573 = vadd.f32 %v486, %v571
        %v574 = vmul.f32 %v573, 0.35355338
        %v575 = vld [vmem:[%s7] sm:$0x1]
        %v577 = vlaneseq
        %v578 = vshrl.u32 %v577, 7
        %v579 = vsub.s32 0, %v578
        %v580 = vrot.slane %v575, %v579
        %v582 = vadd.f32 %v486, %v580
        %v583 = vmul.f32 %v582, 0.35355338
        %vm584 = vcmask 64512
        %v586 = vsel %vm584, %v583, 0
        %v589 = vsel %vm584, %v409, 0
        %v592 = vsel %vm584, %v410, 0
        %594 = vmatprep.subr.mxu0 0.0
        %595 = vmatpush1.xpose.msra.mxu0 %v589
        %596 = vmatprep.subr.mxu0 0.0
        %597 = vmatpush1.xpose.msra.mxu0 %v592
        %598 = vmatprep.subr.mxu0 0.0
        %599 = vmatpush1.xpose.msra.mxu0 0.0
        %600 = vmatprep.subr.mxu0 0.0
        %601 = vmatpush1.xpose.msra.mxu0 0.0
        %602 = vmatprep.subr.mxu0 0.0
        %603 = vmatpush1.xpose.msra.mxu0 0.0
        %604 = vmatprep.subr.mxu0 0.0
        %605 = vmatpush1.xpose.msra.mxu0 0.0
        %606 = vmatprep.subr.mxu0 0.0
        %607 = vmatpush1.xpose.msra.mxu0 0.0
        %608 = vmatprep.subr.mxu0 0.0
        %609 = vmatpush1.xpose.msra.mxu0 0.0
        %610 = vmatprep.subr.mxu0 0.0
        %611 = vmatpush1.xpose.msra.mxu0 0.0
        %612 = vmatprep.subr.mxu0 0.0
        %613 = vmatpush1.xpose.msra.mxu0 0.0
        %614 = vmatprep.subr.mxu0 0.0
        %615 = vmatpush1.xpose.msra.mxu0 0.0
        %616 = vmatprep.subr.mxu0 0.0
        %617 = vmatpush1.xpose.msra.mxu0 0.0
        %618 = vmatprep.subr.mxu0 0.0
        %619 = vmatpush1.xpose.msra.mxu0 0.0
        %620 = vmatprep.subr.mxu0 0.0
        %621 = vmatpush1.xpose.msra.mxu0 0.0
        %622 = vmatprep.subr.mxu0 0.0
        %623 = vmatpush1.xpose.msra.mxu0 0.0
        %624 = vmatprep.subr.mxu0 0.0
        %625 = vmatpush1.xpose.msra.mxu0 0.0
        %626 = vmatprep.subr.mxu0 0.0
        %627 = vmatpush1.xpose.msra.mxu0 0.0
        %628 = vmatprep.subr.mxu0 0.0
        %629 = vmatpush1.xpose.msra.mxu0 0.0
        %630 = vmatprep.subr.mxu0 0.0
        %631 = vmatpush1.xpose.msra.mxu0 0.0
        %632 = vmatprep.subr.mxu0 0.0
        %633 = vmatpush1.xpose.msra.mxu0 0.0
        %634 = vmatprep.subr.mxu0 0.0
        %635 = vmatpush1.xpose.msra.mxu0 0.0
        %636 = vmatprep.subr.mxu0 0.0
        %637 = vmatpush1.xpose.msra.mxu0 0.0
        %638 = vmatprep.subr.mxu0 0.0
        %639 = vmatpush1.xpose.msra.mxu0 0.0
        %640 = vmatprep.subr.mxu0 0.0
        %641 = vmatpush1.xpose.msra.mxu0 0.0
        %642 = vmatprep.subr.mxu0 0.0
        %643 = vmatpush1.xpose.msra.mxu0 0.0
        %644 = vmatprep.subr.mxu0 0.0
        %645 = vmatpush1.xpose.msra.mxu0 0.0
        %646 = vmatprep.subr.mxu0 0.0
        %647 = vmatpush1.xpose.msra.mxu0 0.0
        %648 = vmatprep.subr.mxu0 0.0
        %649 = vmatpush1.xpose.msra.mxu0 0.0
        %650 = vmatprep.subr.mxu0 0.0
        %651 = vmatpush1.xpose.msra.mxu0 0.0
        %652 = vmatprep.subr.mxu0 0.0
        %653 = vmatpush1.xpose.msra.mxu0 0.0
        %654 = vmatprep.subr.mxu0 0.0
        %655 = vmatpush1.xpose.msra.mxu0 0.0
        %656 = vmatprep.subr.mxu0 0.0
        %657 = vmatpush1.xpose.msra.mxu0 0.0
        %658 = vmatprep.mubr.f32.mxu0 0.0
        %659 = vmatmul.mubr.f32.gmra.mrb[0].mxu0 %v586
        %v660 = vpop.f32.mrb[0].mxu0
        %v661 = vadd.f32 0.0, %v660
        %v662 = vpop.f32.mrb[0].mxu0
        %663 = vdwg.mxu0
        %665 = vrot.lane.b32.xlu0 %v661, 120
        %v666 = vpop.permute.xlu0 %665
        %v668 = vrot.slane %v661, 1
        %669 = vrot.lane.b32.xlu0 %v668, 1
        %v670 = vpop.permute.xlu0 %669
        %vm672 = vcmask 7168
        %v673 = vsel %vm672, %v666, %v670
        %674 = vrot.lane.b32.xlu0 %v661, 121
        %v675 = vpop.permute.xlu0 %674
        %677 = vrot.lane.b32.xlu0 %v668, 2
        %v678 = vpop.permute.xlu0 %677
        %vm680 = vcmask 15360
        %v681 = vsel %vm680, %v675, %v678
        %682 = vrot.lane.b32.xlu0 %v661, 122
        %v683 = vpop.permute.xlu0 %682
        %685 = vrot.lane.b32.xlu0 %v668, 3
        %v686 = vpop.permute.xlu0 %685
        %vm688 = vcmask 23552
        %v689 = vsel %vm688, %v683, %v686
        %690 = vrot.lane.b32.xlu0 %v661, 123
        %v691 = vpop.permute.xlu0 %690
        %693 = vrot.lane.b32.xlu0 %v668, 4
        %v694 = vpop.permute.xlu0 %693
        %vm696 = vcmask 31744
        %v697 = vsel %vm696, %v691, %v694
        %698 = vrot.lane.b32.xlu0 %v661, 124
        %v699 = vpop.permute.xlu0 %698
        %701 = vrot.lane.b32.xlu0 %v668, 5
        %v702 = vpop.permute.xlu0 %701
        %vm704 = vcmask 39936
        %v705 = vsel %vm704, %v699, %v702
        %706 = vrot.lane.b32.xlu0 %v661, 125
        %v707 = vpop.permute.xlu0 %706
        %709 = vrot.lane.b32.xlu0 %v668, 6
        %v710 = vpop.permute.xlu0 %709
        %vm712 = vcmask 48128
        %v713 = vsel %vm712, %v707, %v710
        %714 = vrot.lane.b32.xlu0 %v661, 126
        %v715 = vpop.permute.xlu0 %714
        %717 = vrot.lane.b32.xlu0 %v668, 7
        %v718 = vpop.permute.xlu0 %717
        %vm720 = vcmask 56320
        %v721 = vsel %vm720, %v715, %v718
        %722 = vrot.lane.b32.xlu0 %v661, 127
        %v723 = vpop.permute.xlu0 %722
        %vm725 = vcmask 1040384
        %v726 = vsel %vm725, %v673, %v681
        %vm727 = vcmask 1041408
        %v728 = vsel %vm727, %v726, %v689
        %vm729 = vcmask 1042432
        %v730 = vsel %vm729, %v728, %v697
        %vm731 = vcmask 1043456
        %v732 = vsel %vm731, %v730, %v705
        %vm733 = vcmask 1044480
        %v734 = vsel %vm733, %v732, %v713
        %vm735 = vcmask 1045504
        %v736 = vsel %vm735, %v734, %v721
        %vm737 = vcmask 1046528
        %v738 = vsel %vm737, %v736, %v723
        %v740 = vsel %vm584, %v574, 0
        %v743 = vsel %vm584, %v563, 0
        %745 = vmatprep.subr.mxu0 0.0
        %746 = vmatpush1.xpose.msra.mxu0 %v743
        %747 = vmatprep.subr.mxu0 0.0
        %748 = vmatpush1.xpose.msra.mxu0 0.0
        %749 = vmatprep.subr.mxu0 0.0
        %750 = vmatpush1.xpose.msra.mxu0 0.0
        %751 = vmatprep.subr.mxu0 0.0
        %752 = vmatpush1.xpose.msra.mxu0 0.0
        %753 = vmatprep.subr.mxu0 0.0
        %754 = vmatpush1.xpose.msra.mxu0 0.0
        %755 = vmatprep.subr.mxu0 0.0
        %756 = vmatpush1.xpose.msra.mxu0 0.0
        %757 = vmatprep.subr.mxu0 0.0
        %758 = vmatpush1.xpose.msra.mxu0 0.0
        %759 = vmatprep.subr.mxu0 0.0
        %760 = vmatpush1.xpose.msra.mxu0 0.0
        %761 = vmatprep.subr.mxu0 0.0
        %762 = vmatpush1.xpose.msra.mxu0 0.0
        %763 = vmatprep.subr.mxu0 0.0
        %764 = vmatpush1.xpose.msra.mxu0 0.0
        %765 = vmatprep.subr.mxu0 0.0
        %766 = vmatpush1.xpose.msra.mxu0 0.0
        %767 = vmatprep.subr.mxu0 0.0
        %768 = vmatpush1.xpose.msra.mxu0 0.0
        %769 = vmatprep.subr.mxu0 0.0
        %770 = vmatpush1.xpose.msra.mxu0 0.0
        %771 = vmatprep.subr.mxu0 0.0
        %772 = vmatpush1.xpose.msra.mxu0 0.0
        %773 = vmatprep.subr.mxu0 0.0
        %774 = vmatpush1.xpose.msra.mxu0 0.0
        %775 = vmatprep.subr.mxu0 0.0
        %776 = vmatpush1.xpose.msra.mxu0 0.0
        %777 = vmatprep.subr.mxu0 0.0
        %778 = vmatpush1.xpose.msra.mxu0 0.0
        %779 = vmatprep.subr.mxu0 0.0
        %780 = vmatpush1.xpose.msra.mxu0 0.0
        %781 = vmatprep.subr.mxu0 0.0
        %782 = vmatpush1.xpose.msra.mxu0 0.0
        %783 = vmatprep.subr.mxu0 0.0
        %784 = vmatpush1.xpose.msra.mxu0 0.0
        %785 = vmatprep.subr.mxu0 0.0
        %786 = vmatpush1.xpose.msra.mxu0 0.0
        %787 = vmatprep.subr.mxu0 0.0
        %788 = vmatpush1.xpose.msra.mxu0 0.0
        %789 = vmatprep.subr.mxu0 0.0
        %790 = vmatpush1.xpose.msra.mxu0 0.0
        %791 = vmatprep.subr.mxu0 0.0
        %792 = vmatpush1.xpose.msra.mxu0 0.0
        %793 = vmatprep.subr.mxu0 0.0
        %794 = vmatpush1.xpose.msra.mxu0 0.0
        %795 = vmatprep.subr.mxu0 0.0
        %796 = vmatpush1.xpose.msra.mxu0 0.0
        %797 = vmatprep.subr.mxu0 0.0
        %798 = vmatpush1.xpose.msra.mxu0 0.0
        %799 = vmatprep.subr.mxu0 0.0
        %800 = vmatpush1.xpose.msra.mxu0 0.0
        %801 = vmatprep.subr.mxu0 0.0
        %802 = vmatpush1.xpose.msra.mxu0 0.0
        %803 = vmatprep.subr.mxu0 0.0
        %804 = vmatpush1.xpose.msra.mxu0 0.0
        %805 = vmatprep.subr.mxu0 0.0
        %806 = vmatpush1.xpose.msra.mxu0 0.0
        %807 = vmatprep.subr.mxu0 0.0
        %808 = vmatpush1.xpose.msra.mxu0 0.0
        %809 = vmatprep.mubr.f32.mxu0 0.0
        %810 = vmatmul.mubr.f32.gmra.mrb[0].mxu0 %v740
        %v811 = vpop.f32.mrb[0].mxu0
        %v812 = vadd.f32 %v738, %v811
        %v813 = vpop.f32.mrb[0].mxu0
        %814 = vdwg.mxu0
        %v815 = vsel %vm584, %v812, -inf
        %816 = vmax.xlane.f32.xlu0 %v815
        %v817 = vpop.xlane.xlu0 %816
        %v818 = vsub.f32 %v812, %v817
        %v819 = vmul.f32 %v818, 1.442695
        %v820 = vpow.pop %v819
        %v821 = vsel %vm584, %v820, 0.0
        %822 = vadd.xlane.f32.xlu0 %v821
        %v823 = vpop.xlane.xlu0 %822
        %v824 = vrcp.pop %v823
        %v825 = vmul.f32 %v820, %v824
        %826 = vrot.lane.b32.xlu0 %v563, 112
        %v827 = vpop.permute.xlu0 %826
        %v830 = vsel %vm584, %v825, 0
        %832 = vmatprep.subr.mxu0 0.0
        %833 = vmatpush1.msra.mxu0 %v827
        %834 = vmatprep.subr.mxu0 0.0
        %835 = vmatpush1.msra.mxu0 0.0
        %836 = vmatprep.subr.mxu0 0.0
        %837 = vmatpush1.msra.mxu0 0.0
        %838 = vmatprep.subr.mxu0 0.0
        %839 = vmatpush1.msra.mxu0 0.0
        %840 = vmatprep.subr.mxu0 0.0
        %841 = vmatpush1.msra.mxu0 0.0
        %842 = vmatprep.subr.mxu0 0.0
        %843 = vmatpush1.msra.mxu0 0.0
        %844 = vmatprep.subr.mxu0 0.0
        %845 = vmatpush1.msra.mxu0 0.0
        %846 = vmatprep.subr.mxu0 0.0
        %847 = vmatpush1.msra.mxu0 0.0
        %848 = vmatprep.subr.mxu0 0.0
        %849 = vmatpush1.msra.mxu0 0.0
        %850 = vmatprep.subr.mxu0 0.0
        %851 = vmatpush1.msra.mxu0 0.0
        %852 = vmatprep.subr.mxu0 0.0
        %853 = vmatpush1.msra.mxu0 0.0
        %854 = vmatprep.subr.mxu0 0.0
        %855 = vmatpush1.msra.mxu0 0.0
        %856 = vmatprep.subr.mxu0 0.0
        %857 = vmatpush1.msra.mxu0 0.0
        %858 = vmatprep.subr.mxu0 0.0
        %859 = vmatpush1.msra.mxu0 0.0
        %860 = vmatprep.subr.mxu0 0.0
        %861 = vmatpush1.msra.mxu0 0.0
        %862 = vmatprep.subr.mxu0 0.0
        %863 = vmatpush1.msra.mxu0 0.0
        %864 = vmatprep.subr.mxu0 0.0
        %865 = vmatpush1.msra.mxu0 0.0
        %866 = vmatprep.subr.mxu0 0.0
        %867 = vmatpush1.msra.mxu0 0.0
        %868 = vmatprep.subr.mxu0 0.0
        %869 = vmatpush1.msra.mxu0 0.0
        %870 = vmatprep.subr.mxu0 0.0
        %871 = vmatpush1.msra.mxu0 0.0
        %872 = vmatprep.subr.mxu0 0.0
        %873 = vmatpush1.msra.mxu0 0.0
        %874 = vmatprep.subr.mxu0 0.0
        %875 = vmatpush1.msra.mxu0 0.0
        %876 = vmatprep.subr.mxu0 0.0
        %877 = vmatpush1.msra.mxu0 0.0
        %878 = vmatprep.subr.mxu0 0.0
        %879 = vmatpush1.msra.mxu0 0.0
        %880 = vmatprep.subr.mxu0 0.0
        %881 = vmatpush1.msra.mxu0 0.0
        %882 = vmatprep.subr.mxu0 0.0
        %883 = vmatpush1.msra.mxu0 0.0
        %884 = vmatprep.subr.mxu0 0.0
        %885 = vmatpush1.msra.mxu0 0.0
        %886 = vmatprep.subr.mxu0 0.0
        %887 = vmatpush1.msra.mxu0 0.0
        %888 = vmatprep.subr.mxu0 0.0
        %889 = vmatpush1.msra.mxu0 0.0
        %890 = vmatprep.subr.mxu0 0.0
        %891 = vmatpush1.msra.mxu0 0.0
        %892 = vmatprep.subr.mxu0 0.0
        %893 = vmatpush1.msra.mxu0 0.0
        %894 = vmatprep.subr.mxu0 0.0
        %895 = vmatpush1.msra.mxu0 0.0
        %896 = vmatprep.mubr.f32.mxu0 0.0
        %897 = vmatmul.mubr.f32.gmra.mrb[0].mxu0 %v830
        %v898 = vpop.f32.mrb[0].mxu0
        %v899 = vadd.f32 0.0, %v898
        %v900 = vpop.f32.mrb[0].mxu0
        %901 = vdwg.mxu0
        %902 = vrot.lane.b32.xlu0 %v583, 120
        %v903 = vpop.permute.xlu0 %902
        %904 = vrot.lane.b32.xlu0 %v409, 120
        %v905 = vpop.permute.xlu0 %904
        %906 = vrot.lane.b32.xlu0 %v410, 120
        %v907 = vpop.permute.xlu0 %906
        %v908 = vsel %vm584, %v903, 0
        %v910 = vsel %vm584, %v905, 0
        %v912 = vsel %vm584, %v907, 0
        %914 = vmatprep.subr.mxu0 0.0
        %915 = vmatpush1.xpose.msra.mxu0 %v910
        %916 = vmatprep.subr.mxu0 0.0
        %917 = vmatpush1.xpose.msra.mxu0 %v912
        %918 = vmatprep.subr.mxu0 0.0
        %919 = vmatpush1.xpose.msra.mxu0 0.0
        %920 = vmatprep.subr.mxu0 0.0
        %921 = vmatpush1.xpose.msra.mxu0 0.0
        %922 = vmatprep.subr.mxu0 0.0
        %923 = vmatpush1.xpose.msra.mxu0 0.0
        %924 = vmatprep.subr.mxu0 0.0
        %925 = vmatpush1.xpose.msra.mxu0 0.0
        %926 = vmatprep.subr.mxu0 0.0
        %927 = vmatpush1.xpose.msra.mxu0 0.0
        %928 = vmatprep.subr.mxu0 0.0
        %929 = vmatpush1.xpose.msra.mxu0 0.0
        %930 = vmatprep.subr.mxu0 0.0
        %931 = vmatpush1.xpose.msra.mxu0 0.0
        %932 = vmatprep.subr.mxu0 0.0
        %933 = vmatpush1.xpose.msra.mxu0 0.0
        %934 = vmatprep.subr.mxu0 0.0
        %935 = vmatpush1.xpose.msra.mxu0 0.0
        %936 = vmatprep.subr.mxu0 0.0
        %937 = vmatpush1.xpose.msra.mxu0 0.0
        %938 = vmatprep.subr.mxu0 0.0
        %939 = vmatpush1.xpose.msra.mxu0 0.0
        %940 = vmatprep.subr.mxu0 0.0
        %941 = vmatpush1.xpose.msra.mxu0 0.0
        %942 = vmatprep.subr.mxu0 0.0
        %943 = vmatpush1.xpose.msra.mxu0 0.0
        %944 = vmatprep.subr.mxu0 0.0
        %945 = vmatpush1.xpose.msra.mxu0 0.0
        %946 = vmatprep.subr.mxu0 0.0
        %947 = vmatpush1.xpose.msra.mxu0 0.0
        %948 = vmatprep.subr.mxu0 0.0
        %949 = vmatpush1.xpose.msra.mxu0 0.0
        %950 = vmatprep.subr.mxu0 0.0
        %951 = vmatpush1.xpose.msra.mxu0 0.0
        %952 = vmatprep.subr.mxu0 0.0
        %953 = vmatpush1.xpose.msra.mxu0 0.0
        %954 = vmatprep.subr.mxu0 0.0
        %955 = vmatpush1.xpose.msra.mxu0 0.0
        %956 = vmatprep.subr.mxu0 0.0
        %957 = vmatpush1.xpose.msra.mxu0 0.0
        %958 = vmatprep.subr.mxu0 0.0
        %959 = vmatpush1.xpose.msra.mxu0 0.0
        %960 = vmatprep.subr.mxu0 0.0
        %961 = vmatpush1.xpose.msra.mxu0 0.0
        %962 = vmatprep.subr.mxu0 0.0
        %963 = vmatpush1.xpose.msra.mxu0 0.0
        %964 = vmatprep.subr.mxu0 0.0
        %965 = vmatpush1.xpose.msra.mxu0 0.0
        %966 = vmatprep.subr.mxu0 0.0
        %967 = vmatpush1.xpose.msra.mxu0 0.0
        %968 = vmatprep.subr.mxu0 0.0
        %969 = vmatpush1.xpose.msra.mxu0 0.0
        %970 = vmatprep.subr.mxu0 0.0
        %971 = vmatpush1.xpose.msra.mxu0 0.0
        %972 = vmatprep.subr.mxu0 0.0
        %973 = vmatpush1.xpose.msra.mxu0 0.0
        %974 = vmatprep.subr.mxu0 0.0
        %975 = vmatpush1.xpose.msra.mxu0 0.0
        %976 = vmatprep.subr.mxu0 0.0
        %977 = vmatpush1.xpose.msra.mxu0 0.0
        %978 = vmatprep.mubr.f32.mxu0 0.0
        %979 = vmatmul.mubr.f32.gmra.mrb[0].mxu0 %v908
        %v980 = vpop.f32.mrb[0].mxu0
        %v981 = vadd.f32 0.0, %v980
        %v982 = vpop.f32.mrb[0].mxu0
        %983 = vdwg.mxu0
        %985 = vrot.lane.b32.xlu0 %v981, 120
        %v986 = vpop.permute.xlu0 %985
        %v988 = vrot.slane %v981, 1
        %989 = vrot.lane.b32.xlu0 %v988, 1
        %v990 = vpop.permute.xlu0 %989
        %v992 = vsel %vm672, %v986, %v990
        %993 = vrot.lane.b32.xlu0 %v981, 121
        %v994 = vpop.permute.xlu0 %993
        %996 = vrot.lane.b32.xlu0 %v988, 2
        %v997 = vpop.permute.xlu0 %996
        %v999 = vsel %vm680, %v994, %v997
        %1000 = vrot.lane.b32.xlu0 %v981, 122
        %v1001 = vpop.permute.xlu0 %1000
        %1003 = vrot.lane.b32.xlu0 %v988, 3
        %v1004 = vpop.permute.xlu0 %1003
        %v1006 = vsel %vm688, %v1001, %v1004
        %1007 = vrot.lane.b32.xlu0 %v981, 123
        %v1008 = vpop.permute.xlu0 %1007
        %1010 = vrot.lane.b32.xlu0 %v988, 4
        %v1011 = vpop.permute.xlu0 %1010
        %v1013 = vsel %vm696, %v1008, %v1011
        %1014 = vrot.lane.b32.xlu0 %v981, 124
        %v1015 = vpop.permute.xlu0 %1014
        %1017 = vrot.lane.b32.xlu0 %v988, 5
        %v1018 = vpop.permute.xlu0 %1017
        %v1020 = vsel %vm704, %v1015, %v1018
        %1021 = vrot.lane.b32.xlu0 %v981, 125
        %v1022 = vpop.permute.xlu0 %1021
        %1024 = vrot.lane.b32.xlu0 %v988, 6
        %v1025 = vpop.permute.xlu0 %1024
        %v1027 = vsel %vm712, %v1022, %v1025
        %1028 = vrot.lane.b32.xlu0 %v981, 126
        %v1029 = vpop.permute.xlu0 %1028
        %1031 = vrot.lane.b32.xlu0 %v988, 7
        %v1032 = vpop.permute.xlu0 %1031
        %v1034 = vsel %vm720, %v1029, %v1032
        %1035 = vrot.lane.b32.xlu0 %v981, 127
        %v1036 = vpop.permute.xlu0 %1035
        %v1038 = vsel %vm725, %v992, %v999
        %v1039 = vsel %vm727, %v1038, %v1006
        %v1040 = vsel %vm729, %v1039, %v1013
        %v1041 = vsel %vm731, %v1040, %v1020
        %v1042 = vsel %vm733, %v1041, %v1027
        %v1043 = vsel %vm735, %v1042, %v1034
        %v1044 = vsel %vm737, %v1043, %v1036
        %1045 = vrot.lane.b32.xlu0 %v574, 120
        %v1046 = vpop.permute.xlu0 %1045
        %1047 = vrot.lane.b32.xlu0 %v563, 120
        %v1048 = vpop.permute.xlu0 %1047
        %v1049 = vsel %vm584, %v1046, 0
        %v1051 = vsel %vm584, %v1048, 0
        %1053 = vmatprep.subr.mxu0 0.0
        %1054 = vmatpush1.xpose.msra.mxu0 %v1051
        %1055 = vmatprep.subr.mxu0 0.0
        %1056 = vmatpush1.xpose.msra.mxu0 0.0
        %1057 = vmatprep.subr.mxu0 0.0
        %1058 = vmatpush1.xpose.msra.mxu0 0.0
        %1059 = vmatprep.subr.mxu0 0.0
        %1060 = vmatpush1.xpose.msra.mxu0 0.0
        %1061 = vmatprep.subr.mxu0 0.0
        %1062 = vmatpush1.xpose.msra.mxu0 0.0
        %1063 = vmatprep.subr.mxu0 0.0
        %1064 = vmatpush1.xpose.msra.mxu0 0.0
        %1065 = vmatprep.subr.mxu0 0.0
        %1066 = vmatpush1.xpose.msra.mxu0 0.0
        %1067 = vmatprep.subr.mxu0 0.0
        %1068 = vmatpush1.xpose.msra.mxu0 0.0
        %1069 = vmatprep.subr.mxu0 0.0
        %1070 = vmatpush1.xpose.msra.mxu0 0.0
        %1071 = vmatprep.subr.mxu0 0.0
        %1072 = vmatpush1.xpose.msra.mxu0 0.0
        %1073 = vmatprep.subr.mxu0 0.0
        %1074 = vmatpush1.xpose.msra.mxu0 0.0
        %1075 = vmatprep.subr.mxu0 0.0
        %1076 = vmatpush1.xpose.msra.mxu0 0.0
        %1077 = vmatprep.subr.mxu0 0.0
        %1078 = vmatpush1.xpose.msra.mxu0 0.0
        %1079 = vmatprep.subr.mxu0 0.0
        %1080 = vmatpush1.xpose.msra.mxu0 0.0
        %1081 = vmatprep.subr.mxu0 0.0
        %1082 = vmatpush1.xpose.msra.mxu0 0.0
        %1083 = vmatprep.subr.mxu0 0.0
        %1084 = vmatpush1.xpose.msra.mxu0 0.0
        %1085 = vmatprep.subr.mxu0 0.0
        %1086 = vmatpush1.xpose.msra.mxu0 0.0
        %1087 = vmatprep.subr.mxu0 0.0
        %1088 = vmatpush1.xpose.msra.mxu0 0.0
        %1089 = vmatprep.subr.mxu0 0.0
        %1090 = vmatpush1.xpose.msra.mxu0 0.0
        %1091 = vmatprep.subr.mxu0 0.0
        %1092 = vmatpush1.xpose.msra.mxu0 0.0
        %1093 = vmatprep.subr.mxu0 0.0
        %1094 = vmatpush1.xpose.msra.mxu0 0.0
        %1095 = vmatprep.subr.mxu0 0.0
        %1096 = vmatpush1.xpose.msra.mxu0 0.0
        %1097 = vmatprep.subr.mxu0 0.0
        %1098 = vmatpush1.xpose.msra.mxu0 0.0
        %1099 = vmatprep.subr.mxu0 0.0
        %1100 = vmatpush1.xpose.msra.mxu0 0.0
        %1101 = vmatprep.subr.mxu0 0.0
        %1102 = vmatpush1.xpose.msra.mxu0 0.0
        %1103 = vmatprep.subr.mxu0 0.0
        %1104 = vmatpush1.xpose.msra.mxu0 0.0
        %1105 = vmatprep.subr.mxu0 0.0
        %1106 = vmatpush1.xpose.msra.mxu0 0.0
        %1107 = vmatprep.subr.mxu0 0.0
        %1108 = vmatpush1.xpose.msra.mxu0 0.0
        %1109 = vmatprep.subr.mxu0 0.0
        %1110 = vmatpush1.xpose.msra.mxu0 0.0
        %1111 = vmatprep.subr.mxu0 0.0
        %1112 = vmatpush1.xpose.msra.mxu0 0.0
        %1113 = vmatprep.subr.mxu0 0.0
        %1114 = vmatpush1.xpose.msra.mxu0 0.0
        %1115 = vmatprep.subr.mxu0 0.0
        %1116 = vmatpush1.xpose.msra.mxu0 0.0
        %1117 = vmatprep.mubr.f32.mxu0 0.0
        %1118 = vmatmul.mubr.f32.gmra.mrb[0].mxu0 %v1049
        %v1119 = vpop.f32.mrb[0].mxu0
        %v1120 = vadd.f32 %v1044, %v1119
        %v1121 = vpop.f32.mrb[0].mxu0
        %1122 = vdwg.mxu0
        %v1123 = vsel %vm584, %v1120, -inf
        %1124 = vmax.xlane.f32.xlu0 %v1123
        %v1125 = vpop.xlane.xlu0 %1124
        %v1126 = vsub.f32 %v1120, %v1125
        %v1127 = vmul.f32 %v1126, 1.442695
        %v1128 = vpow.pop %v1127
        %v1129 = vsel %vm584, %v1128, 0.0
        %1130 = vadd.xlane.f32.xlu0 %v1129
        %v1131 = vpop.xlane.xlu0 %1130
        %v1132 = vrcp.pop %v1131
        %v1133 = vmul.f32 %v1128, %v1132
        %1134 = vrot.lane.b32.xlu0 %v563, 104
        %v1135 = vpop.permute.xlu0 %1134
        %v1138 = vsel %vm584, %v1133, 0
        %1140 = vmatprep.subr.mxu0 0.0
        %1141 = vmatpush1.msra.mxu0 %v1135
        %1142 = vmatprep.subr.mxu0 0.0
        %1143 = vmatpush1.msra.mxu0 0.0
        %1144 = vmatprep.subr.mxu0 0.0
        %1145 = vmatpush1.msra.mxu0 0.0
        %1146 = vmatprep.subr.mxu0 0.0
        %1147 = vmatpush1.msra.mxu0 0.0
        %1148 = vmatprep.subr.mxu0 0.0
        %1149 = vmatpush1.msra.mxu0 0.0
        %1150 = vmatprep.subr.mxu0 0.0
        %1151 = vmatpush1.msra.mxu0 0.0
        %1152 = vmatprep.subr.mxu0 0.0
        %1153 = vmatpush1.msra.mxu0 0.0
        %1154 = vmatprep.subr.mxu0 0.0
        %1155 = vmatpush1.msra.mxu0 0.0
        %1156 = vmatprep.subr.mxu0 0.0
        %1157 = vmatpush1.msra.mxu0 0.0
        %1158 = vmatprep.subr.mxu0 0.0
        %1159 = vmatpush1.msra.mxu0 0.0
        %1160 = vmatprep.subr.mxu0 0.0
        %1161 = vmatpush1.msra.mxu0 0.0
        %1162 = vmatprep.subr.mxu0 0.0
        %1163 = vmatpush1.msra.mxu0 0.0
        %1164 = vmatprep.subr.mxu0 0.0
        %1165 = vmatpush1.msra.mxu0 0.0
        %1166 = vmatprep.subr.mxu0 0.0
        %1167 = vmatpush1.msra.mxu0 0.0
        %1168 = vmatprep.subr.mxu0 0.0
        %1169 = vmatpush1.msra.mxu0 0.0
        %1170 = vmatprep.subr.mxu0 0.0
        %1171 = vmatpush1.msra.mxu0 0.0
        %1172 = vmatprep.subr.mxu0 0.0
        %1173 = vmatpush1.msra.mxu0 0.0
        %1174 = vmatprep.subr.mxu0 0.0
        %1175 = vmatpush1.msra.mxu0 0.0
        %1176 = vmatprep.subr.mxu0 0.0
        %1177 = vmatpush1.msra.mxu0 0.0
        %1178 = vmatprep.subr.mxu0 0.0
        %1179 = vmatpush1.msra.mxu0 0.0
        %1180 = vmatprep.subr.mxu0 0.0
        %1181 = vmatpush1.msra.mxu0 0.0
        %1182 = vmatprep.subr.mxu0 0.0
        %1183 = vmatpush1.msra.mxu0 0.0
        %1184 = vmatprep.subr.mxu0 0.0
        %1185 = vmatpush1.msra.mxu0 0.0
        %1186 = vmatprep.subr.mxu0 0.0
        %1187 = vmatpush1.msra.mxu0 0.0
        %1188 = vmatprep.subr.mxu0 0.0
        %1189 = vmatpush1.msra.mxu0 0.0
        %1190 = vmatprep.subr.mxu0 0.0
        %1191 = vmatpush1.msra.mxu0 0.0
        %1192 = vmatprep.subr.mxu0 0.0
        %1193 = vmatpush1.msra.mxu0 0.0
        %1194 = vmatprep.subr.mxu0 0.0
        %1195 = vmatpush1.msra.mxu0 0.0
        %1196 = vmatprep.subr.mxu0 0.0
        %1197 = vmatpush1.msra.mxu0 0.0
        %1198 = vmatprep.subr.mxu0 0.0
        %1199 = vmatpush1.msra.mxu0 0.0
        %1200 = vmatprep.subr.mxu0 0.0
        %1201 = vmatpush1.msra.mxu0 0.0
        %1202 = vmatprep.subr.mxu0 0.0
        %1203 = vmatpush1.msra.mxu0 0.0
        %1204 = vmatprep.mubr.f32.mxu0 0.0
        %1205 = vmatmul.mubr.f32.gmra.mrb[0].mxu0 %v1138
        %v1206 = vpop.f32.mrb[0].mxu0
        %v1207 = vadd.f32 0.0, %v1206
        %v1208 = vpop.f32.mrb[0].mxu0
        %1209 = vdwg.mxu0
        %1211 = vrot.lane.b32.xlu0 %v1207, 8
        %v1212 = vpop.permute.xlu0 %1211
        %v1214 = vsel %vm584, %v899, %v1212
        %v1215 = vld [vmem:[%s5] sm:$0xff]
        %v1216 = vld [vmem:[%s5 + $0x8] sm:$0xff]
        %vm1217 = vcmask 130048
        %v1219 = vsel %vm1217, %v1214, 0
        %1221 = vmatprep.subr.mxu0 0.0
        %1222 = vmatpush1.msra.mxu0 %v1215
        %1223 = vmatprep.subr.mxu0 0.0
        %1224 = vmatpush1.msra.mxu0 %v1216
        %1225 = vmatprep.subr.mxu0 0.0
        %1226 = vmatpush1.msra.mxu0 0.0
        %1227 = vmatprep.subr.mxu0 0.0
        %1228 = vmatpush1.msra.mxu0 0.0
        %1229 = vmatprep.subr.mxu0 0.0
        %1230 = vmatpush1.msra.mxu0 0.0
        %1231 = vmatprep.subr.mxu0 0.0
        %1232 = vmatpush1.msra.mxu0 0.0
        %1233 = vmatprep.subr.mxu0 0.0
        %1234 = vmatpush1.msra.mxu0 0.0
        %1235 = vmatprep.subr.mxu0 0.0
        %1236 = vmatpush1.msra.mxu0 0.0
        %1237 = vmatprep.subr.mxu0 0.0
        %1238 = vmatpush1.msra.mxu0 0.0
        %1239 = vmatprep.subr.mxu0 0.0
        %1240 = vmatpush1.msra.mxu0 0.0
        %1241 = vmatprep.subr.mxu0 0.0
        %1242 = vmatpush1.msra.mxu0 0.0
        %1243 = vmatprep.subr.mxu0 0.0
        %1244 = vmatpush1.msra.mxu0 0.0
        %1245 = vmatprep.subr.mxu0 0.0
        %1246 = vmatpush1.msra.mxu0 0.0
        %1247 = vmatprep.subr.mxu0 0.0
        %1248 = vmatpush1.msra.mxu0 0.0
        %1249 = vmatprep.subr.mxu0 0.0
        %1250 = vmatpush1.msra.mxu0 0.0
        %1251 = vmatprep.subr.mxu0 0.0
        %1252 = vmatpush1.msra.mxu0 0.0
        %1253 = vmatprep.subr.mxu0 0.0
        %1254 = vmatpush1.msra.mxu0 0.0
        %1255 = vmatprep.subr.mxu0 0.0
        %1256 = vmatpush1.msra.mxu0 0.0
        %1257 = vmatprep.subr.mxu0 0.0
        %1258 = vmatpush1.msra.mxu0 0.0
        %1259 = vmatprep.subr.mxu0 0.0
        %1260 = vmatpush1.msra.mxu0 0.0
        %1261 = vmatprep.subr.mxu0 0.0
        %1262 = vmatpush1.msra.mxu0 0.0
        %1263 = vmatprep.subr.mxu0 0.0
        %1264 = vmatpush1.msra.mxu0 0.0
        %1265 = vmatprep.subr.mxu0 0.0
        %1266 = vmatpush1.msra.mxu0 0.0
        %1267 = vmatprep.subr.mxu0 0.0
        %1268 = vmatpush1.msra.mxu0 0.0
        %1269 = vmatprep.subr.mxu0 0.0
        %1270 = vmatpush1.msra.mxu0 0.0
        %1271 = vmatprep.subr.mxu0 0.0
        %1272 = vmatpush1.msra.mxu0 0.0
        %1273 = vmatprep.subr.mxu0 0.0
        %1274 = vmatpush1.msra.mxu0 0.0
        %1275 = vmatprep.subr.mxu0 0.0
        %1276 = vmatpush1.msra.mxu0 0.0
        %1277 = vmatprep.subr.mxu0 0.0
        %1278 = vmatpush1.msra.mxu0 0.0
        %1279 = vmatprep.subr.mxu0 0.0
        %1280 = vmatpush1.msra.mxu0 0.0
        %1281 = vmatprep.subr.mxu0 0.0
        %1282 = vmatpush1.msra.mxu0 0.0
        %1283 = vmatprep.subr.mxu0 0.0
        %1284 = vmatpush1.msra.mxu0 0.0
        %1285 = vmatprep.mubr.f32.mxu0 0.0
        %1286 = vmatmul.mubr.f32.gmra.mrb[0].mxu0 %v1219
        %v1287 = vpop.f32.mrb[0].mxu0
        %v1288 = vadd.f32 0.0, %v1287
        %v1289 = vpop.f32.mrb[0].mxu0
        %1290 = vdwg.mxu0
        %v1291 = vadd.f32 %v407, %v1288
        %v1292 = vsel %vm415, %v1291, 0.0
        %1293 = vadd.xlane.f32.xlu0 %v1292
        %v1294 = vpop.xlane.xlu0 %1293
        %v1295 = vrcp.pop 32.0
        %v1296 = vmul.f32 %v1294, %v1295
        %v1297 = vsub.f32 %v1291, %v1296
        %v1298 = vmul.f32 %v1297, %v1297
        %v1299 = vsel %vm415, %v1298, 0.0
        %1300 = vadd.xlane.f32.xlu0 %v1299
        %v1301 = vpop.xlane.xlu0 %1300
        %v1302 = vmul.f32 %v1301, %v1295
        %v1303 = vadd.f32 %v1302, 1e-05
        %v1304 = vrsqrt.pop %v1303
        %v1305 = vmul.f32 %v1297, %v1304
        %v1306 = vld [vmem:[%s8] sm:$0x1]
        %v1308 = vlaneseq
        %v1309 = vshrl.u32 %v1308, 7
        %v1310 = vsub.s32 0, %v1309
        %v1311 = vrot.slane %v1306, %v1310
        %v1313 = vmul.f32 %v1305, %v1311
        %v1314 = vld [vmem:[%s9] sm:$0x1]
        %v1316 = vlaneseq
        %v1317 = vshrl.u32 %v1316, 7
        %v1318 = vsub.s32 0, %v1317
        %v1319 = vrot.slane %v1314, %v1318
        %v1321 = vadd.f32 %v1313, %v1319
        %1322 = vst.msk [vmem:[%s402] sm:$0xff] %vm415, %v1321
        %s1323 = sand.u32 %s256, 1
        %s1324 = scalar_lea.sflag [#allocation4], %s1323
        %s1325 = sand.u32 %s256, 1
        %s1326 = smul.addr %s1325, 8
        %s1327 = scalar_lea.vmem [#allocation7], %s1326
        // Predicated region
        $region69: #{tpu_custom_call.1} parent=59 // pred_check
          %p1328 = pneg %p266
        $region70: #{tpu_custom_call.1} parent=59 // pred_check_branch
          %1330 = sbr.rel (%p1328) target = $region72
        $region71: #{tpu_custom_call.1} parent=59 // pred_region
          %s1332 = ssub.s32 128, 128
          %1333 = vsyncadd %s1324, %s1332
          %s1334 = smul.addr %s28, 128
          %s1335 = scalar_lea.hbm %s10, %s1334
          %s1337 = sshll.u32 %s1327, 4
          %s1338 = int_to_ptr.vmem [resolvable:$true] %s1337
          %1340 = dma.vmem_to_hbm [thread:$0]  %s1338, 128, %s1335, %s1324
        $region72: #{tpu_custom_call.1} parent=59 // pred_fallthru
          _
      $region60: #{tpu_custom_call.1} parent=5 // pred_fallthru
        _
      %p1341 = scmp.le.s32.totalorder 2, %s23
      // Predicated region
      $region73: #{tpu_custom_call.1} parent=5 // pred_check
        %p1342 = pneg %p1341
      $region74: #{tpu_custom_call.1} parent=5 // pred_check_branch
        %1344 = sbr.rel (%p1342) target = $region76
      $region75: #{tpu_custom_call.1} parent=5 // pred_region
        %s1345 = ssub.s32 %s23, 2
        // Predicated region
        $region77: #{tpu_custom_call.1} parent=75 // pred_check
          %p1346 = pneg %p272
        $region78: #{tpu_custom_call.1} parent=75 // pred_check_branch
          %1348 = sbr.rel (%p1346) target = $region80
        $region79: #{tpu_custom_call.1} parent=75 // pred_region
          %s1349 = sand.u32 %s257, 1
          %s1350 = scalar_lea.sflag [#allocation4], %s1349
          %s1351 = sand.u32 %s257, 1
          %s1352 = smul.addr %s1351, 8
          %s1353 = scalar_lea.vmem [#allocation7], %s1352
          %1354 = dma.done %s1350, 128
        $region80: #{tpu_custom_call.1} parent=75 // pred_fallthru
          _
      $region76: #{tpu_custom_call.1} parent=5 // pred_fallthru
        _
    $region6: #{tpu_custom_call.1} parent=1 // loop_footer
      %s27 = sadd.s32 1, %s23
    $region7: #{tpu_custom_call.1} parent=1 // loop_footer_branch
      %22 = sbr.rel target = $region3
    $region8: #{tpu_custom_call.1} parent=1 // loop_exit
      _
    %1355 = vsyncpa [#allocation3], 1
    %s1356 = scalar_lea.sflag [#allocation3], 1
    %1357 = vsyncpa %s1356, 1
    %1358 = vsyncpa [#allocation6], 1
    %1359 = vsyncpa [#allocation4], 1
    %s1360 = scalar_lea.sflag [#allocation4], 1
    %1361 = vsyncpa %s1360, 1

</llo_original>
